<compile_context>
chip_gen: v6e
topology: v6e:2x2x1
jax: 0.10.0
libtpu: 0.0.40
codegen_flags: <defaults>
</compile_context>

<pallas_src>
import jax
import jax.numpy as jnp
from jax.experimental import pallas as pl
from jax.experimental.pallas import tpu as pltpu

H_DIM = 400        # logical hidden dim (matches PyTorch module)
H_PAD = 512        # padded hidden dim: 4x128 lanes
IN_DIM = 2
OUT_DIM = 2
OUT_PAD = 128      # lane-dense padded output width
MAX_TILE_B = 2048  # batch tile cap (amortizes per-grid-step overhead)
MIN_B_FOR_TWO_TILES = 256            # force >=2 grid steps (v7x dual TC)
VMEM_LIMIT_BYTES = 32 * 1024 * 1024  # v5e scoped default (16 MiB) is too small


def _cdiv(a, b):
    return -(-a // b)


def _round_up(x, m):
    return _cdiv(x, m) * m


def generator_kernel(z_ref,
                     w1_ref, b1_ref,
                     w2_ref, b2_ref,
                     w3_ref, b3_ref,
                     w4_ref, b4_ref,
                     out_ref):
    # ----- Layer 1: Linear(2, H) + ReLU on the VPU (K=2 outer product) -------
    z = z_ref[...]                               # (TB, 2)     f32
    w1 = w1_ref[...]                             # (2, H_PAD)  f32
    h = z[:, 0:1] * w1[0:1, :] + z[:, 1:2] * w1[1:2, :] + b1_ref[...]
    h = jnp.maximum(h, 0.0)                      # (TB, H_PAD) f32

    # ----- Layer 2: Linear(H, H) + ReLU (bf16 MXU, f32 accumulate) -----------
    h = jnp.dot(h.astype(jnp.bfloat16), w2_ref[...],
                preferred_element_type=jnp.float32)
    h = jnp.maximum(h + b2_ref[...], 0.0)

    # ----- Layer 3: Linear(H, H) + ReLU ---------------------------------------
    h = jnp.dot(h.astype(jnp.bfloat16), w3_ref[...],
                preferred_element_type=jnp.float32)
    h = jnp.maximum(h + b3_ref[...], 0.0)

    # ----- Layer 4: Linear(H, 2) folded into a lane-dense 128-wide output ----
    o = jnp.dot(h.astype(jnp.bfloat16), w4_ref[...],
                preferred_element_type=jnp.float32)
    out_ref[...] = (o + b4_ref[...]).astype(out_ref.dtype)   # bf16 writeback


def pad_params(raw_params):
    """Zero-pad raw (400-dim) params to the TPU-friendly padded layout and
    cast MXU weights to bf16 (exact: padded lanes stay 0 through ReLU)."""
    w1, b1, w2, b2, w3, b3, w4, b4 = raw_params
    ph = H_PAD - H_DIM
    po = OUT_PAD - OUT_DIM
    w1p = jnp.pad(w1, ((0, 0), (0, ph)))                        # (2, 512)   f32
    b1p = jnp.pad(b1, ((0, 0), (0, ph)))                        # (1, 512)   f32
    w2p = jnp.pad(w2, ((0, ph), (0, ph))).astype(jnp.bfloat16)  # (512, 512) bf16
    b2p = jnp.pad(b2, ((0, 0), (0, ph)))                        # (1, 512)   f32
    w3p = jnp.pad(w3, ((0, ph), (0, ph))).astype(jnp.bfloat16)  # (512, 512) bf16
    b3p = jnp.pad(b3, ((0, 0), (0, ph)))                        # (1, 512)   f32
    w4p = jnp.pad(w4, ((0, ph), (0, po))).astype(jnp.bfloat16)  # (512, 128) bf16
    b4p = jnp.pad(b4, ((0, 0), (0, po)))                        # (1, 128)   f32
    return (w1p, b1p, w2p, b2p, w3p, b3p, w4p, b4p)


def _choose_tiling(B):
    """Balanced batch tiles: minimal padding, >=2 tiles for dual-TC chips."""
    n_tiles = _cdiv(B, MAX_TILE_B)
    if B >= MIN_B_FOR_TWO_TILES:
        n_tiles = max(n_tiles, 2)          # v7x: give both TensorCores work
    tile_b = _round_up(_cdiv(B, n_tiles), 16)   # 16: bf16-out sublane tile
    return n_tiles, tile_b


def generator_forward_padded(z, padded_params):
    """z: [B, 2] f32 -> lane-dense padded output [n_tiles*tile_b, 128] bf16.

    Downstream consumers that can accept the padded layout should use this
    directly and skip the extra slice pass over HBM."""
    B = z.shape[0]
    w1, b1, w2, b2, w3, b3, w4, b4 = padded_params

    n_tiles, tile_b = _choose_tiling(B)
    b_pad = n_tiles * tile_b
    if b_pad != B:
        z = jnp.pad(z, ((0, b_pad - B), (0, 0)))

    const_idx = lambda i: (0, 0)   # weights stay VMEM-resident across steps

    return pl.pallas_call(
        generator_kernel,
        out_shape=jax.ShapeDtypeStruct((b_pad, OUT_PAD), jnp.bfloat16),
        grid_spec=pltpu.PrefetchScalarGridSpec(
            num_scalar_prefetch=0,
            grid=(n_tiles,),
            in_specs=[
                pl.BlockSpec((tile_b, IN_DIM), lambda i: (i, 0)),   # z
                pl.BlockSpec((IN_DIM, H_PAD), const_idx),           # w1
                pl.BlockSpec((1, H_PAD), const_idx),                # b1
                pl.BlockSpec((H_PAD, H_PAD), const_idx),            # w2
                pl.BlockSpec((1, H_PAD), const_idx),                # b2
                pl.BlockSpec((H_PAD, H_PAD), const_idx),            # w3
                pl.BlockSpec((1, H_PAD), const_idx),                # b3
                pl.BlockSpec((H_PAD, OUT_PAD), const_idx),          # w4
                pl.BlockSpec((1, OUT_PAD), const_idx),              # b4
            ],
            out_specs=pl.BlockSpec((tile_b, OUT_PAD), lambda i: (i, 0)),
        ),
        compiler_params=pltpu.CompilerParams(
            dimension_semantics=("parallel",),
            vmem_limit_bytes=VMEM_LIMIT_BYTES),
    )(z, w1, b1, w2, b2, w3, b3, w4, b4)


def generator_forward(z, padded_params):
    """z: [B, 2] float32 -> [B, 2] float32 (matches the PyTorch module API)."""
    B = z.shape[0]
    out_padded = generator_forward_padded(z, padded_params)
    return out_padded[:B, :OUT_DIM].astype(jnp.float32)


def init_raw_params(key):
    """Deterministic init mimicking PyTorch Linear (uniform +/- 1/sqrt(fan_in)).
    Weights stored (in_features, out_features), so x @ W == PyTorch x @ W.T."""
    dims = [(IN_DIM, H_DIM), (H_DIM, H_DIM), (H_DIM, H_DIM), (H_DIM, OUT_DIM)]
    params = []
    for (fan_in, fan_out) in dims:
        key, kw, kb = jax.random.split(key, 3)
        bound = 1.0 / jnp.sqrt(float(fan_in))
        w = jax.random.uniform(kw, (fan_in, fan_out), jnp.float32, -bound, bound)
        b = jax.random.uniform(kb, (1, fan_out), jnp.float32, -bound, bound)
        params.extend([w, b])
    return tuple(params)


def reference_forward(z, raw_params):
    """Pure-JAX reference mirroring the kernel's numerics exactly
    (f32 layer-1 outer-product, bf16 MXU operands + f32 accumulation,
    bf16 output rounding)."""
    w1, b1, w2, b2, w3, b3, w4, b4 = raw_params
    h = jnp.maximum(z[:, 0:1] * w1[0:1, :] + z[:, 1:2] * w1[1:2, :] + b1, 0.0)
    h = jnp.dot(h.astype(jnp.bfloat16), w2.astype(jnp.bfloat16),
                preferred_element_type=jnp.float32)
    h = jnp.maximum(h + b2, 0.0)
    h = jnp.dot(h.astype(jnp.bfloat16), w3.astype(jnp.bfloat16),
                preferred_element_type=jnp.float32)
    h = jnp.maximum(h + b3, 0.0)
    o = jnp.dot(h.astype(jnp.bfloat16), w4.astype(jnp.bfloat16),
                preferred_element_type=jnp.float32)
    return (o + b4).astype(jnp.bfloat16).astype(jnp.float32)


if __name__ == "__main__":
    key = jax.random.PRNGKey(0)
    kp, kz = jax.random.split(key)

    raw_params = init_raw_params(kp)
    padded_params = pad_params(raw_params)

    # Small batch (with padding), aligned small batch, and a multi-tile batch
    # (B=300 >= 256 forces a 2-step grid -> exercises the dual-TC path).
    for B in (3, 8, 300):
        kz, kb = jax.random.split(kz)
        z = jax.random.normal(kb, (B, IN_DIM), dtype=jnp.float32)

        out = jax.block_until_ready(generator_forward(z, padded_params))
        ref = reference_forward(z, raw_params)

        assert out.shape == (B, OUT_DIM), out.shape
        max_err = float(jnp.max(jnp.abs(out - ref)))
        assert jnp.allclose(out, ref, atol=1e-2, rtol=1e-2), \
            f"B={B}: max abs err = {max_err}"

    print("KERNEL_OK")
</pallas_src>

<mosaic_0001>
module attributes {stable_mosaic.version = 11 : i64} {
  func.func @generator_kernel(%arg0: i32, %arg1: memref<16x2xf32, #tpu.memory_space<vmem>>, %arg2: memref<2x512xf32, #tpu.memory_space<vmem>>, %arg3: memref<1x512xf32, #tpu.memory_space<vmem>>, %arg4: memref<512x512xbf16, #tpu.memory_space<vmem>>, %arg5: memref<1x512xf32, #tpu.memory_space<vmem>>, %arg6: memref<512x512xbf16, #tpu.memory_space<vmem>>, %arg7: memref<1x512xf32, #tpu.memory_space<vmem>>, %arg8: memref<512x128xbf16, #tpu.memory_space<vmem>>, %arg9: memref<1x128xf32, #tpu.memory_space<vmem>>, %arg10: memref<16x128xbf16, #tpu.memory_space<vmem>>) attributes {dimension_semantics = [#tpu.dimension_semantics<parallel>], iteration_bounds = array<i64: 1>, scalar_prefetch = 0 : i64, scratch_operands = 0 : i64, tpu.core_type = #tpu.core_type<tc>, window_params = [{transform_indices = @transform_0, window_bounds = array<i64: 16, 2>}, {pipeline_mode = #tpu.pipeline_mode<synchronous>, transform_indices = @transform_1, window_bounds = array<i64: 2, 512>}, {pipeline_mode = #tpu.pipeline_mode<synchronous>, transform_indices = @transform_2, window_bounds = array<i64: 1, 512>}, {pipeline_mode = #tpu.pipeline_mode<synchronous>, transform_indices = @transform_3, window_bounds = array<i64: 512, 512>}, {pipeline_mode = #tpu.pipeline_mode<synchronous>, transform_indices = @transform_4, window_bounds = array<i64: 1, 512>}, {pipeline_mode = #tpu.pipeline_mode<synchronous>, transform_indices = @transform_5, window_bounds = array<i64: 512, 512>}, {pipeline_mode = #tpu.pipeline_mode<synchronous>, transform_indices = @transform_6, window_bounds = array<i64: 1, 512>}, {pipeline_mode = #tpu.pipeline_mode<synchronous>, transform_indices = @transform_7, window_bounds = array<i64: 512, 128>}, {pipeline_mode = #tpu.pipeline_mode<synchronous>, transform_indices = @transform_8, window_bounds = array<i64: 1, 128>}, {transform_indices = @transform_9, window_bounds = array<i64: 16, 128>}]} {
    %c0 = arith.constant 0 : index
    %c0_0 = arith.constant 0 : index
    %0 = vector.load %arg1[%c0, %c0_0] : memref<16x2xf32, #tpu.memory_space<vmem>>, vector<16x2xf32>
    %c0_1 = arith.constant 0 : index
    %c0_2 = arith.constant 0 : index
    %1 = vector.load %arg2[%c0_1, %c0_2] : memref<2x512xf32, #tpu.memory_space<vmem>>, vector<2x512xf32>
    %2 = vector.extract_strided_slice %0 {offsets = [0, 0], sizes = [16, 1], strides = [1, 1]} : vector<16x2xf32> to vector<16x1xf32>
    %3 = vector.extract_strided_slice %1 {offsets = [0, 0], sizes = [1, 512], strides = [1, 1]} : vector<2x512xf32> to vector<1x512xf32>
    %4 = vector.broadcast %2 : vector<16x1xf32> to vector<16x512xf32>
    %5 = vector.broadcast %3 : vector<1x512xf32> to vector<16x512xf32>
    %6 = arith.mulf %4, %5 : vector<16x512xf32>
    %7 = vector.extract_strided_slice %0 {offsets = [0, 1], sizes = [16, 1], strides = [1, 1]} : vector<16x2xf32> to vector<16x1xf32>
    %8 = vector.extract_strided_slice %1 {offsets = [1, 0], sizes = [1, 512], strides = [1, 1]} : vector<2x512xf32> to vector<1x512xf32>
    %9 = vector.broadcast %7 : vector<16x1xf32> to vector<16x512xf32>
    %10 = vector.broadcast %8 : vector<1x512xf32> to vector<16x512xf32>
    %11 = arith.mulf %9, %10 : vector<16x512xf32>
    %12 = arith.addf %6, %11 : vector<16x512xf32>
    %c0_3 = arith.constant 0 : index
    %c0_4 = arith.constant 0 : index
    %13 = vector.load %arg3[%c0_3, %c0_4] : memref<1x512xf32, #tpu.memory_space<vmem>>, vector<1x512xf32>
    %14 = vector.broadcast %13 : vector<1x512xf32> to vector<16x512xf32>
    %15 = arith.addf %12, %14 : vector<16x512xf32>
    %cst = arith.constant 0.000000e+00 : f32
    %16 = vector.broadcast %cst : f32 to vector<16x512xf32>
    %17 = arith.maximumf %15, %16 : vector<16x512xf32>
    %18 = arith.truncf %17 : vector<16x512xf32> to vector<16x512xbf16>
    %c0_5 = arith.constant 0 : index
    %c0_6 = arith.constant 0 : index
    %19 = vector.load %arg4[%c0_5, %c0_6] : memref<512x512xbf16, #tpu.memory_space<vmem>>, vector<512x512xbf16>
    %cst_7 = arith.constant dense<0.000000e+00> : vector<16x512xf32>
    %20 = tpu.matmul %18, %19, %cst_7 {dimension_numbers = #tpu.dot_dimension_numbers<[1], [0], [0], [1], [0, 0, 1, 1], [], []>} : vector<16x512xbf16>, vector<512x512xbf16>, vector<16x512xf32> -> vector<16x512xf32>
    %c0_8 = arith.constant 0 : index
    %c0_9 = arith.constant 0 : index
    %21 = vector.load %arg5[%c0_8, %c0_9] : memref<1x512xf32, #tpu.memory_space<vmem>>, vector<1x512xf32>
    %22 = vector.broadcast %21 : vector<1x512xf32> to vector<16x512xf32>
    %23 = arith.addf %20, %22 : vector<16x512xf32>
    %cst_10 = arith.constant 0.000000e+00 : f32
    %24 = vector.broadcast %cst_10 : f32 to vector<16x512xf32>
    %25 = arith.maximumf %23, %24 : vector<16x512xf32>
    %26 = arith.truncf %25 : vector<16x512xf32> to vector<16x512xbf16>
    %c0_11 = arith.constant 0 : index
    %c0_12 = arith.constant 0 : index
    %27 = vector.load %arg6[%c0_11, %c0_12] : memref<512x512xbf16, #tpu.memory_space<vmem>>, vector<512x512xbf16>
    %cst_13 = arith.constant dense<0.000000e+00> : vector<16x512xf32>
    %28 = tpu.matmul %26, %27, %cst_13 {dimension_numbers = #tpu.dot_dimension_numbers<[1], [0], [0], [1], [0, 0, 1, 1], [], []>} : vector<16x512xbf16>, vector<512x512xbf16>, vector<16x512xf32> -> vector<16x512xf32>
    %c0_14 = arith.constant 0 : index
    %c0_15 = arith.constant 0 : index
    %29 = vector.load %arg7[%c0_14, %c0_15] : memref<1x512xf32, #tpu.memory_space<vmem>>, vector<1x512xf32>
    %30 = vector.broadcast %29 : vector<1x512xf32> to vector<16x512xf32>
    %31 = arith.addf %28, %30 : vector<16x512xf32>
    %cst_16 = arith.constant 0.000000e+00 : f32
    %32 = vector.broadcast %cst_16 : f32 to vector<16x512xf32>
    %33 = arith.maximumf %31, %32 : vector<16x512xf32>
    %34 = arith.truncf %33 : vector<16x512xf32> to vector<16x512xbf16>
    %c0_17 = arith.constant 0 : index
    %c0_18 = arith.constant 0 : index
    %35 = vector.load %arg8[%c0_17, %c0_18] : memref<512x128xbf16, #tpu.memory_space<vmem>>, vector<512x128xbf16>
    %cst_19 = arith.constant dense<0.000000e+00> : vector<16x128xf32>
    %36 = tpu.matmul %34, %35, %cst_19 {dimension_numbers = #tpu.dot_dimension_numbers<[1], [0], [0], [1], [0, 0, 1, 1], [], []>} : vector<16x512xbf16>, vector<512x128xbf16>, vector<16x128xf32> -> vector<16x128xf32>
    %c0_20 = arith.constant 0 : index
    %c0_21 = arith.constant 0 : index
    %37 = vector.load %arg9[%c0_20, %c0_21] : memref<1x128xf32, #tpu.memory_space<vmem>>, vector<1x128xf32>
    %38 = vector.broadcast %37 : vector<1x128xf32> to vector<16x128xf32>
    %39 = arith.addf %36, %38 : vector<16x128xf32>
    %40 = arith.truncf %39 : vector<16x128xf32> to vector<16x128xbf16>
    %c0_22 = arith.constant 0 : index
    %c0_23 = arith.constant 0 : index
    %41 = vector.load %arg10[%c0_22, %c0_23] : memref<16x128xbf16, #tpu.memory_space<vmem>>, vector<16x128xbf16>
    tpu.vector_store %arg10[%c0_22, %c0_23], %40 {strides = array<i32>} : memref<16x128xbf16, #tpu.memory_space<vmem>>, vector<16x128xbf16>,
    return
  }
  func.func @transform_0(%arg0: i32) -> (i32, i32) {
    %c0_i32 = arith.constant 0 : i32
    %c0_i32_0 = arith.constant 0 : i32
    return %arg0, %c0_i32 : i32, i32
  }
  func.func @transform_1(%arg0: i32) -> (i32, i32) {
    %c0_i32 = arith.constant 0 : i32
    %c0_i32_0 = arith.constant 0 : i32
    %c0_i32_1 = arith.constant 0 : i32
    return %c0_i32, %c0_i32_0 : i32, i32
  }
  func.func @transform_2(%arg0: i32) -> (i32, i32) {
    %c0_i32 = arith.constant 0 : i32
    %c0_i32_0 = arith.constant 0 : i32
    %c0_i32_1 = arith.constant 0 : i32
    return %c0_i32, %c0_i32_0 : i32, i32
  }
  func.func @transform_3(%arg0: i32) -> (i32, i32) {
    %c0_i32 = arith.constant 0 : i32
    %c0_i32_0 = arith.constant 0 : i32
    %c0_i32_1 = arith.constant 0 : i32
    return %c0_i32, %c0_i32_0 : i32, i32
  }
  func.func @transform_4(%arg0: i32) -> (i32, i32) {
    %c0_i32 = arith.constant 0 : i32
    %c0_i32_0 = arith.constant 0 : i32
    %c0_i32_1 = arith.constant 0 : i32
    return %c0_i32, %c0_i32_0 : i32, i32
  }
  func.func @transform_5(%arg0: i32) -> (i32, i32) {
    %c0_i32 = arith.constant 0 : i32
    %c0_i32_0 = arith.constant 0 : i32
    %c0_i32_1 = arith.constant 0 : i32
    return %c0_i32, %c0_i32_0 : i32, i32
  }
  func.func @transform_6(%arg0: i32) -> (i32, i32) {
    %c0_i32 = arith.constant 0 : i32
    %c0_i32_0 = arith.constant 0 : i32
    %c0_i32_1 = arith.constant 0 : i32
    return %c0_i32, %c0_i32_0 : i32, i32
  }
  func.func @transform_7(%arg0: i32) -> (i32, i32) {
    %c0_i32 = arith.constant 0 : i32
    %c0_i32_0 = arith.constant 0 : i32
    %c0_i32_1 = arith.constant 0 : i32
    return %c0_i32, %c0_i32_0 : i32, i32
  }
  func.func @transform_8(%arg0: i32) -> (i32, i32) {
    %c0_i32 = arith.constant 0 : i32
    %c0_i32_0 = arith.constant 0 : i32
    %c0_i32_1 = arith.constant 0 : i32
    return %c0_i32, %c0_i32_0 : i32, i32
  }
  func.func @transform_9(%arg0: i32) -> (i32, i32) {
    %c0_i32 = arith.constant 0 : i32
    %c0_i32_0 = arith.constant 0 : i32
    return %arg0, %c0_i32 : i32, i32
  }
}

</mosaic_0001>

<llo_original>
// kernel: tpu_custom_call.1
$region0: #{tpu_custom_call.1}
  #allocation0 [shape = 'u32[]', space=smem, size = 0x4, offset = 0x4, fixed_abs, tag = 'smem constant byte address 0x4 - core index']
  #allocation1 [shape = 'u32[144,128]{1,0:T(1,128)}', space=vmem, size = 0x12000, scoped, tag = 'internal scratch']
  %s0 = inlined_call_operand.vmem [shape: f32[16,2], index: 0, kind: input, shape index: {}]
  %s1 = inlined_call_operand.vmem [shape: f32[2,512], index: 1, kind: input, shape index: {}]
  %s2 = inlined_call_operand.vmem [shape: f32[1,512], index: 2, kind: input, shape index: {}]
  %s3 = inlined_call_operand.hbm [shape: bf16[512,512], index: 3, kind: input, shape index: {}]
  %s4 = inlined_call_operand.vmem [shape: f32[1,512], index: 4, kind: input, shape index: {}]
  %s5 = inlined_call_operand.hbm [shape: bf16[512,512], index: 5, kind: input, shape index: {}]
  %s6 = inlined_call_operand.vmem [shape: f32[1,512], index: 6, kind: input, shape index: {}]
  %s7 = inlined_call_operand.hbm [shape: bf16[512,128], index: 7, kind: input, shape index: {}]
  %s8 = inlined_call_operand.vmem [shape: f32[1,128], index: 8, kind: input, shape index: {}]
  %s9 = inlined_call_operand.hbm [shape: bf16[16,128], index: 9, kind: output, shape index: {}]
  %s10 = sld [smem:[#allocation0]]
  $region58: #{tpu_custom_call.1} parent=0
    _
  %s12 = ssub.s32 1, %s10
  %s13 = scalar_select 0, %s12, %s10
  $region1: #{tpu_custom_call.1} parent=0
    #allocation2 [shape = 'u8[524288]{0}', space=vmem, size = 0x80000, scoped, tag = 'input window, operand 3, single buffered']
    #allocation3 [shape = 's32[1]{0}', space=sflag, size = 0x4, scoped, tag = 'scoped memory for tpu_custom_call.1']
    #allocation4 [shape = 's32[1]{0}', space=sflag, size = 0x4, scoped, tag = 'scoped memory for tpu_custom_call.1']
    #allocation5 [shape = 'u8[524288]{0}', space=vmem, size = 0x80000, scoped, tag = 'input window, operand 5, single buffered']
    #allocation6 [shape = 's32[1]{0}', space=sflag, size = 0x4, scoped, tag = 'scoped memory for tpu_custom_call.1']
    #allocation7 [shape = 'u8[131072]{0}', space=vmem, size = 0x20000, scoped, tag = 'input window, operand 7, single buffered']
    #allocation8 [shape = 'u8[4096]{0}', space=vmem, size = 0x1000, scoped, tag = 'output window, operand 0, single buffered']
    %14 = vsyncpa [#allocation3], 0
    %15 = vsyncpa [#allocation6], 0
    %16 = vsyncpa [#allocation4], 0
    // Predicated region
    $region2: #{tpu_custom_call.1} parent=1 // pred_check
      _
    $region3: #{tpu_custom_call.1} parent=1 // pred_check_branch
      %18 = sbr.rel (0) target = $region5
    $region4: #{tpu_custom_call.1} parent=1 // pred_region
      _
    $region5: #{tpu_custom_call.1} parent=1 // pred_fallthru
      _
    // Predicated region
    $region6: #{tpu_custom_call.1} parent=1 // pred_check
      _
    $region7: #{tpu_custom_call.1} parent=1 // pred_check_branch
      %20 = sbr.rel (0) target = $region9
    $region8: #{tpu_custom_call.1} parent=1 // pred_region
      _
    $region9: #{tpu_custom_call.1} parent=1 // pred_fallthru
      _
    // Predicated region
    $region10: #{tpu_custom_call.1} parent=1 // pred_check
      _
    $region11: #{tpu_custom_call.1} parent=1 // pred_check_branch
      %22 = sbr.rel (0) target = $region13
    $region12: #{tpu_custom_call.1} parent=1 // pred_region
      _
    $region13: #{tpu_custom_call.1} parent=1 // pred_fallthru
      _
    // Predicated region
    $region14: #{tpu_custom_call.1} parent=1 // pred_check
      _
    $region15: #{tpu_custom_call.1} parent=1 // pred_check_branch
      %24 = sbr.rel (0) target = $region17
    $region16: #{tpu_custom_call.1} parent=1 // pred_region
      %s26 = ssub.s32 16384, 16384
      %27 = vsyncadd [#allocation3], %s26
      %s28 = sshll.u32 [#allocation2], 4
      %s29 = int_to_ptr.vmem [resolvable:$true] %s28
      %34 = dma.hbm_to_vmem [thread:$0]  %s3, 16384, %s29, [#allocation3], 256, 256, 16
    $region17: #{tpu_custom_call.1} parent=1 // pred_fallthru
      _
    // Predicated region
    $region18: #{tpu_custom_call.1} parent=1 // pred_check
      _
    $region19: #{tpu_custom_call.1} parent=1 // pred_check_branch
      %36 = sbr.rel (0) target = $region21
    $region20: #{tpu_custom_call.1} parent=1 // pred_region
      _
    $region21: #{tpu_custom_call.1} parent=1 // pred_fallthru
      _
    // Predicated region
    $region22: #{tpu_custom_call.1} parent=1 // pred_check
      _
    $region23: #{tpu_custom_call.1} parent=1 // pred_check_branch
      %38 = sbr.rel (0) target = $region25
    $region24: #{tpu_custom_call.1} parent=1 // pred_region
      %s40 = ssub.s32 16384, 16384
      %41 = vsyncadd [#allocation6], %s40
      %s42 = sshll.u32 [#allocation5], 4
      %s43 = int_to_ptr.vmem [resolvable:$true] %s42
      %48 = dma.hbm_to_vmem [thread:$0]  %s5, 16384, %s43, [#allocation6], 256, 256, 16
    $region25: #{tpu_custom_call.1} parent=1 // pred_fallthru
      _
    // Predicated region
    $region26: #{tpu_custom_call.1} parent=1 // pred_check
      _
    $region27: #{tpu_custom_call.1} parent=1 // pred_check_branch
      %50 = sbr.rel (0) target = $region29
    $region28: #{tpu_custom_call.1} parent=1 // pred_region
      _
    $region29: #{tpu_custom_call.1} parent=1 // pred_fallthru
      _
    // Predicated region
    $region30: #{tpu_custom_call.1} parent=1 // pred_check
      _
    $region31: #{tpu_custom_call.1} parent=1 // pred_check_branch
      %52 = sbr.rel (0) target = $region33
    $region32: #{tpu_custom_call.1} parent=1 // pred_region
      %s54 = ssub.s32 4096, 4096
      %55 = vsyncadd [#allocation6], %s54
      %s56 = sshll.u32 [#allocation7], 4
      %s57 = int_to_ptr.vmem [resolvable:$true] %s56
      %62 = dma.hbm_to_vmem [thread:$0]  %s7, 4096, %s57, [#allocation6], 64, 64, 4
    $region33: #{tpu_custom_call.1} parent=1 // pred_fallthru
      _
    // Predicated region
    $region34: #{tpu_custom_call.1} parent=1 // pred_check
      _
    $region35: #{tpu_custom_call.1} parent=1 // pred_check_branch
      %64 = sbr.rel (0) target = $region37
    $region36: #{tpu_custom_call.1} parent=1 // pred_region
      _
    $region37: #{tpu_custom_call.1} parent=1 // pred_fallthru
      _
    // Predicated region
    $region38: #{tpu_custom_call.1} parent=1 // pred_check
      _
    $region39: #{tpu_custom_call.1} parent=1 // pred_check_branch
      %66 = sbr.rel (0) target = $region41
    $region40: #{tpu_custom_call.1} parent=1 // pred_region
      %67 = dma.done [#allocation3], 16384
    $region41: #{tpu_custom_call.1} parent=1 // pred_fallthru
      _
    // Predicated region
    $region42: #{tpu_custom_call.1} parent=1 // pred_check
      _
    $region43: #{tpu_custom_call.1} parent=1 // pred_check_branch
      %69 = sbr.rel (0) target = $region45
    $region44: #{tpu_custom_call.1} parent=1 // pred_region
      %70 = dma.done [#allocation6], 16384
    $region45: #{tpu_custom_call.1} parent=1 // pred_fallthru
      _
    // Predicated region
    $region46: #{tpu_custom_call.1} parent=1 // pred_check
      _
    $region47: #{tpu_custom_call.1} parent=1 // pred_check_branch
      %72 = sbr.rel (0) target = $region49
    $region48: #{tpu_custom_call.1} parent=1 // pred_region
      %73 = dma.done [#allocation6], 4096
    $region49: #{tpu_custom_call.1} parent=1 // pred_fallthru
      _
    %v75 = vld [vmem:[%s0] sm:$0xff]
    %v76 = vld [vmem:[%s0 + $0x8] sm:$0xff]
    %v77 = vld [vmem:[%s1] sm:$0xff]
    %79 = vset.pattern.permute.xlu0 0
    %80 = vperm.xlu0 %79, %v75
    %v81 = vpop.permute.xlu0 %80
    %84 = vset.pattern.permute.xlu0 0
    %85 = vperm.xlu0 %84, %v76
    %v86 = vpop.permute.xlu0 %85
    %v89 = vlaneseq
    %v90 = vshrl.u32 %v89, 7
    %v91 = vsub.s32 0, %v90
    %v92 = vrot.slane %v77, %v91
    %v93 = vlaneseq
    %v94 = vshrl.u32 %v93, 7
    %v95 = vsub.s32 2, %v94
    %v96 = vrot.slane %v77, %v95
    %v97 = vlaneseq
    %v98 = vshrl.u32 %v97, 7
    %v99 = vsub.s32 4, %v98
    %v100 = vrot.slane %v77, %v99
    %v101 = vlaneseq
    %v102 = vshrl.u32 %v101, 7
    %v103 = vsub.s32 6, %v102
    %v104 = vrot.slane %v77, %v103
    %v109 = vlaneseq
    %v110 = vshrl.u32 %v109, 7
    %v111 = vsub.s32 0, %v110
    %v112 = vrot.slane %v92, %v111
    %v113 = vlaneseq
    %v114 = vshrl.u32 %v113, 7
    %v115 = vsub.s32 0, %v114
    %v116 = vrot.slane %v96, %v115
    %v117 = vlaneseq
    %v118 = vshrl.u32 %v117, 7
    %v119 = vsub.s32 0, %v118
    %v120 = vrot.slane %v100, %v119
    %v121 = vlaneseq
    %v122 = vshrl.u32 %v121, 7
    %v123 = vsub.s32 0, %v122
    %v124 = vrot.slane %v104, %v123
    %v125 = vmul.f32 %v81, %v112
    %v126 = vmul.f32 %v81, %v116
    %v127 = vmul.f32 %v81, %v120
    %v128 = vmul.f32 %v81, %v124
    %v129 = vmul.f32 %v86, %v112
    %v130 = vmul.f32 %v86, %v116
    %v131 = vmul.f32 %v86, %v120
    %v132 = vmul.f32 %v86, %v124
    %133 = vset.pattern.permute.xlu0 1
    %134 = vperm.xlu0 %133, %v75
    %v135 = vpop.permute.xlu0 %134
    %137 = vset.pattern.permute.xlu0 1
    %138 = vperm.xlu0 %137, %v76
    %v139 = vpop.permute.xlu0 %138
    %v141 = vlaneseq
    %v142 = vshrl.u32 %v141, 7
    %v143 = vsub.s32 1, %v142
    %v144 = vrot.slane %v77, %v143
    %v145 = vlaneseq
    %v146 = vshrl.u32 %v145, 7
    %v147 = vsub.s32 3, %v146
    %v148 = vrot.slane %v77, %v147
    %v149 = vlaneseq
    %v150 = vshrl.u32 %v149, 7
    %v151 = vsub.s32 5, %v150
    %v152 = vrot.slane %v77, %v151
    %v153 = vlaneseq
    %v154 = vshrl.u32 %v153, 7
    %v155 = vsub.s32 7, %v154
    %v156 = vrot.slane %v77, %v155
    %v161 = vlaneseq
    %v162 = vshrl.u32 %v161, 7
    %v163 = vsub.s32 1, %v162
    %v164 = vrot.slane %v144, %v163
    %v165 = vlaneseq
    %v166 = vshrl.u32 %v165, 7
    %v167 = vsub.s32 1, %v166
    %v168 = vrot.slane %v148, %v167
    %v169 = vlaneseq
    %v170 = vshrl.u32 %v169, 7
    %v171 = vsub.s32 1, %v170
    %v172 = vrot.slane %v152, %v171
    %v173 = vlaneseq
    %v174 = vshrl.u32 %v173, 7
    %v175 = vsub.s32 1, %v174
    %v176 = vrot.slane %v156, %v175
    %v177 = vmul.f32 %v135, %v164
    %v178 = vmul.f32 %v135, %v168
    %v179 = vmul.f32 %v135, %v172
    %v180 = vmul.f32 %v135, %v176
    %v181 = vmul.f32 %v139, %v164
    %v182 = vmul.f32 %v139, %v168
    %v183 = vmul.f32 %v139, %v172
    %v184 = vmul.f32 %v139, %v176
    %v185 = vadd.f32 %v125, %v177
    %v186 = vadd.f32 %v126, %v178
    %v187 = vadd.f32 %v127, %v179
    %v188 = vadd.f32 %v128, %v180
    %v189 = vadd.f32 %v129, %v181
    %v190 = vadd.f32 %v130, %v182
    %v191 = vadd.f32 %v131, %v183
    %v192 = vadd.f32 %v132, %v184
    %v193 = vld [vmem:[%s2] sm:$0xf]
    %v195 = vlaneseq
    %v196 = vshrl.u32 %v195, 7
    %v197 = vsub.s32 0, %v196
    %v198 = vrot.slane %v193, %v197
    %v199 = vlaneseq
    %v200 = vshrl.u32 %v199, 7
    %v201 = vsub.s32 1, %v200
    %v202 = vrot.slane %v193, %v201
    %v203 = vlaneseq
    %v204 = vshrl.u32 %v203, 7
    %v205 = vsub.s32 2, %v204
    %v206 = vrot.slane %v193, %v205
    %v207 = vlaneseq
    %v208 = vshrl.u32 %v207, 7
    %v209 = vsub.s32 3, %v208
    %v210 = vrot.slane %v193, %v209
    %v215 = vadd.f32 %v185, %v198
    %v216 = vadd.f32 %v186, %v202
    %v217 = vadd.f32 %v187, %v206
    %v218 = vadd.f32 %v188, %v210
    %v219 = vadd.f32 %v189, %v198
    %v220 = vadd.f32 %v190, %v202
    %v221 = vadd.f32 %v191, %v206
    %v222 = vadd.f32 %v192, %v210
    %v223 = vmax.f32 %v215, 0.0
    %v224 = vmax.f32 %v216, 0.0
    %v225 = vmax.f32 %v217, 0.0
    %v226 = vmax.f32 %v218, 0.0
    %v227 = vmax.f32 %v219, 0.0
    %v228 = vmax.f32 %v220, 0.0
    %v229 = vmax.f32 %v221, 0.0
    %v230 = vmax.f32 %v222, 0.0
    %v231 = vpack.c.bf16 %v227, %v223
    %v232 = vpack.c.bf16 %v228, %v224
    %v233 = vpack.c.bf16 %v229, %v225
    %v234 = vpack.c.bf16 %v230, %v226
    %v235 = vld [vmem:[#allocation2] sm:$0xff]
    %v236 = vld [vmem:[#allocation2 + $0x8] sm:$0xff]
    %v237 = vld [vmem:[#allocation2 + $0x10] sm:$0xff]
    %v238 = vld [vmem:[#allocation2 + $0x18] sm:$0xff]
    %v239 = vld [vmem:[#allocation2 + $0x20] sm:$0xff]
    %v240 = vld [vmem:[#allocation2 + $0x28] sm:$0xff]
    %v241 = vld [vmem:[#allocation2 + $0x30] sm:$0xff]
    %v242 = vld [vmem:[#allocation2 + $0x38] sm:$0xff]
    %v243 = vld [vmem:[#allocation2 + $0x40] sm:$0xff]
    %v244 = vld [vmem:[#allocation2 + $0x48] sm:$0xff]
    %v245 = vld [vmem:[#allocation2 + $0x50] sm:$0xff]
    %v246 = vld [vmem:[#allocation2 + $0x58] sm:$0xff]
    %v247 = vld [vmem:[#allocation2 + $0x60] sm:$0xff]
    %v248 = vld [vmem:[#allocation2 + $0x68] sm:$0xff]
    %v249 = vld [vmem:[#allocation2 + $0x70] sm:$0xff]
    %v250 = vld [vmem:[#allocation2 + $0x78] sm:$0xff]
    %v251 = vld [vmem:[#allocation2 + $0x80] sm:$0xff]
    %v252 = vld [vmem:[#allocation2 + $0x88] sm:$0xff]
    %v253 = vld [vmem:[#allocation2 + $0x90] sm:$0xff]
    %v254 = vld [vmem:[#allocation2 + $0x98] sm:$0xff]
    %v255 = vld [vmem:[#allocation2 + $0xa0] sm:$0xff]
    %v256 = vld [vmem:[#allocation2 + $0xa8] sm:$0xff]
    %v257 = vld [vmem:[#allocation2 + $0xb0] sm:$0xff]
    %v258 = vld [vmem:[#allocation2 + $0xb8] sm:$0xff]
    %v259 = vld [vmem:[#allocation2 + $0xc0] sm:$0xff]
    %v260 = vld [vmem:[#allocation2 + $0xc8] sm:$0xff]
    %v261 = vld [vmem:[#allocation2 + $0xd0] sm:$0xff]
    %v262 = vld [vmem:[#allocation2 + $0xd8] sm:$0xff]
    %v263 = vld [vmem:[#allocation2 + $0xe0] sm:$0xff]
    %v264 = vld [vmem:[#allocation2 + $0xe8] sm:$0xff]
    %v265 = vld [vmem:[#allocation2 + $0xf0] sm:$0xff]
    %v266 = vld [vmem:[#allocation2 + $0xf8] sm:$0xff]
    %v267 = vld [vmem:[#allocation2 + $0x100] sm:$0xff]
    %v268 = vld [vmem:[#allocation2 + $0x108] sm:$0xff]
    %v269 = vld [vmem:[#allocation2 + $0x110] sm:$0xff]
    %v270 = vld [vmem:[#allocation2 + $0x118] sm:$0xff]
    %v271 = vld [vmem:[#allocation2 + $0x120] sm:$0xff]
    %v272 = vld [vmem:[#allocation2 + $0x128] sm:$0xff]
    %v273 = vld [vmem:[#allocation2 + $0x130] sm:$0xff]
    %v274 = vld [vmem:[#allocation2 + $0x138] sm:$0xff]
    %v275 = vld [vmem:[#allocation2 + $0x140] sm:$0xff]
    %v276 = vld [vmem:[#allocation2 + $0x148] sm:$0xff]
    %v277 = vld [vmem:[#allocation2 + $0x150] sm:$0xff]
    %v278 = vld [vmem:[#allocation2 + $0x158] sm:$0xff]
    %v279 = vld [vmem:[#allocation2 + $0x160] sm:$0xff]
    %v280 = vld [vmem:[#allocation2 + $0x168] sm:$0xff]
    %v281 = vld [vmem:[#allocation2 + $0x170] sm:$0xff]
    %v282 = vld [vmem:[#allocation2 + $0x178] sm:$0xff]
    %v283 = vld [vmem:[#allocation2 + $0x180] sm:$0xff]
    %v284 = vld [vmem:[#allocation2 + $0x188] sm:$0xff]
    %v285 = vld [vmem:[#allocation2 + $0x190] sm:$0xff]
    %v286 = vld [vmem:[#allocation2 + $0x198] sm:$0xff]
    %v287 = vld [vmem:[#allocation2 + $0x1a0] sm:$0xff]
    %v288 = vld [vmem:[#allocation2 + $0x1a8] sm:$0xff]
    %v289 = vld [vmem:[#allocation2 + $0x1b0] sm:$0xff]
    %v290 = vld [vmem:[#allocation2 + $0x1b8] sm:$0xff]
    %v291 = vld [vmem:[#allocation2 + $0x1c0] sm:$0xff]
    %v292 = vld [vmem:[#allocation2 + $0x1c8] sm:$0xff]
    %v293 = vld [vmem:[#allocation2 + $0x1d0] sm:$0xff]
    %v294 = vld [vmem:[#allocation2 + $0x1d8] sm:$0xff]
    %v295 = vld [vmem:[#allocation2 + $0x1e0] sm:$0xff]
    %v296 = vld [vmem:[#allocation2 + $0x1e8] sm:$0xff]
    %v297 = vld [vmem:[#allocation2 + $0x1f0] sm:$0xff]
    %v298 = vld [vmem:[#allocation2 + $0x1f8] sm:$0xff]
    %v299 = vld [vmem:[#allocation2 + $0x200] sm:$0xff]
    %v300 = vld [vmem:[#allocation2 + $0x208] sm:$0xff]
    %v301 = vld [vmem:[#allocation2 + $0x210] sm:$0xff]
    %v302 = vld [vmem:[#allocation2 + $0x218] sm:$0xff]
    %v303 = vld [vmem:[#allocation2 + $0x220] sm:$0xff]
    %v304 = vld [vmem:[#allocation2 + $0x228] sm:$0xff]
    %v305 = vld [vmem:[#allocation2 + $0x230] sm:$0xff]
    %v306 = vld [vmem:[#allocation2 + $0x238] sm:$0xff]
    %v307 = vld [vmem:[#allocation2 + $0x240] sm:$0xff]
    %v308 = vld [vmem:[#allocation2 + $0x248] sm:$0xff]
    %v309 = vld [vmem:[#allocation2 + $0x250] sm:$0xff]
    %v310 = vld [vmem:[#allocation2 + $0x258] sm:$0xff]
    %v311 = vld [vmem:[#allocation2 + $0x260] sm:$0xff]
    %v312 = vld [vmem:[#allocation2 + $0x268] sm:$0xff]
    %v313 = vld [vmem:[#allocation2 + $0x270] sm:$0xff]
    %v314 = vld [vmem:[#allocation2 + $0x278] sm:$0xff]
    %v315 = vld [vmem:[#allocation2 + $0x280] sm:$0xff]
    %v316 = vld [vmem:[#allocation2 + $0x288] sm:$0xff]
    %v317 = vld [vmem:[#allocation2 + $0x290] sm:$0xff]
    %v318 = vld [vmem:[#allocation2 + $0x298] sm:$0xff]
    %v319 = vld [vmem:[#allocation2 + $0x2a0] sm:$0xff]
    %v320 = vld [vmem:[#allocation2 + $0x2a8] sm:$0xff]
    %v321 = vld [vmem:[#allocation2 + $0x2b0] sm:$0xff]
    %v322 = vld [vmem:[#allocation2 + $0x2b8] sm:$0xff]
    %v323 = vld [vmem:[#allocation2 + $0x2c0] sm:$0xff]
    %v324 = vld [vmem:[#allocation2 + $0x2c8] sm:$0xff]
    %v325 = vld [vmem:[#allocation2 + $0x2d0] sm:$0xff]
    %v326 = vld [vmem:[#allocation2 + $0x2d8] sm:$0xff]
    %v327 = vld [vmem:[#allocation2 + $0x2e0] sm:$0xff]
    %v328 = vld [vmem:[#allocation2 + $0x2e8] sm:$0xff]
    %v329 = vld [vmem:[#allocation2 + $0x2f0] sm:$0xff]
    %v330 = vld [vmem:[#allocation2 + $0x2f8] sm:$0xff]
    %v331 = vld [vmem:[#allocation2 + $0x300] sm:$0xff]
    %v332 = vld [vmem:[#allocation2 + $0x308] sm:$0xff]
    %v333 = vld [vmem:[#allocation2 + $0x310] sm:$0xff]
    %v334 = vld [vmem:[#allocation2 + $0x318] sm:$0xff]
    %v335 = vld [vmem:[#allocation2 + $0x320] sm:$0xff]
    %v336 = vld [vmem:[#allocation2 + $0x328] sm:$0xff]
    %v337 = vld [vmem:[#allocation2 + $0x330] sm:$0xff]
    %v338 = vld [vmem:[#allocation2 + $0x338] sm:$0xff]
    %v339 = vld [vmem:[#allocation2 + $0x340] sm:$0xff]
    %v340 = vld [vmem:[#allocation2 + $0x348] sm:$0xff]
    %v341 = vld [vmem:[#allocation2 + $0x350] sm:$0xff]
    %v342 = vld [vmem:[#allocation2 + $0x358] sm:$0xff]
    %v343 = vld [vmem:[#allocation2 + $0x360] sm:$0xff]
    %v344 = vld [vmem:[#allocation2 + $0x368] sm:$0xff]
    %v345 = vld [vmem:[#allocation2 + $0x370] sm:$0xff]
    %v346 = vld [vmem:[#allocation2 + $0x378] sm:$0xff]
    %v347 = vld [vmem:[#allocation2 + $0x380] sm:$0xff]
    %v348 = vld [vmem:[#allocation2 + $0x388] sm:$0xff]
    %v349 = vld [vmem:[#allocation2 + $0x390] sm:$0xff]
    %v350 = vld [vmem:[#allocation2 + $0x398] sm:$0xff]
    %v351 = vld [vmem:[#allocation2 + $0x3a0] sm:$0xff]
    %v352 = vld [vmem:[#allocation2 + $0x3a8] sm:$0xff]
    %v353 = vld [vmem:[#allocation2 + $0x3b0] sm:$0xff]
    %v354 = vld [vmem:[#allocation2 + $0x3b8] sm:$0xff]
    %v355 = vld [vmem:[#allocation2 + $0x3c0] sm:$0xff]
    %v356 = vld [vmem:[#allocation2 + $0x3c8] sm:$0xff]
    %v357 = vld [vmem:[#allocation2 + $0x3d0] sm:$0xff]
    %v358 = vld [vmem:[#allocation2 + $0x3d8] sm:$0xff]
    %v359 = vld [vmem:[#allocation2 + $0x3e0] sm:$0xff]
    %v360 = vld [vmem:[#allocation2 + $0x3e8] sm:$0xff]
    %v361 = vld [vmem:[#allocation2 + $0x3f0] sm:$0xff]
    %v362 = vld [vmem:[#allocation2 + $0x3f8] sm:$0xff]
    %v363 = vld [vmem:[%s4] sm:$0xf]
    %v365 = vlaneseq
    %v366 = vshrl.u32 %v365, 7
    %v367 = vsub.s32 0, %v366
    %v368 = vrot.slane %v363, %v367
    %v369 = vlaneseq
    %v370 = vshrl.u32 %v369, 7
    %v371 = vsub.s32 1, %v370
    %v372 = vrot.slane %v363, %v371
    %v373 = vlaneseq
    %v374 = vshrl.u32 %v373, 7
    %v375 = vsub.s32 2, %v374
    %v376 = vrot.slane %v363, %v375
    %v377 = vlaneseq
    %v378 = vshrl.u32 %v377, 7
    %v379 = vsub.s32 3, %v378
    %v380 = vrot.slane %v363, %v379
    %v513 = vunpack.c.l.b16 %v235
    %v514 = vunpack.c.h.b16 %v235
    %v515 = vunpack.c.l.b16 %v236
    %v516 = vunpack.c.h.b16 %v236
    %v517 = vunpack.c.l.b16 %v237
    %v518 = vunpack.c.h.b16 %v237
    %v519 = vunpack.c.l.b16 %v238
    %v520 = vunpack.c.h.b16 %v238
    %v521 = vunpack.c.l.b16 %v239
    %v522 = vunpack.c.h.b16 %v239
    %v523 = vunpack.c.l.b16 %v240
    %v524 = vunpack.c.h.b16 %v240
    %v525 = vunpack.c.l.b16 %v241
    %v526 = vunpack.c.h.b16 %v241
    %v527 = vunpack.c.l.b16 %v242
    %v528 = vunpack.c.h.b16 %v242
    %v529 = vunpack.c.l.b16 %v243
    %v530 = vunpack.c.h.b16 %v243
    %v531 = vunpack.c.l.b16 %v244
    %v532 = vunpack.c.h.b16 %v244
    %v533 = vunpack.c.l.b16 %v245
    %v534 = vunpack.c.h.b16 %v245
    %v535 = vunpack.c.l.b16 %v246
    %v536 = vunpack.c.h.b16 %v246
    %v537 = vunpack.c.l.b16 %v247
    %v538 = vunpack.c.h.b16 %v247
    %v539 = vunpack.c.l.b16 %v248
    %v540 = vunpack.c.h.b16 %v248
    %v541 = vunpack.c.l.b16 %v249
    %v542 = vunpack.c.h.b16 %v249
    %v543 = vunpack.c.l.b16 %v250
    %v544 = vunpack.c.h.b16 %v250
    %v545 = vunpack.c.l.b16 %v251
    %v546 = vunpack.c.h.b16 %v251
    %v547 = vunpack.c.l.b16 %v252
    %v548 = vunpack.c.h.b16 %v252
    %v549 = vunpack.c.l.b16 %v253
    %v550 = vunpack.c.h.b16 %v253
    %v551 = vunpack.c.l.b16 %v254
    %v552 = vunpack.c.h.b16 %v254
    %v553 = vunpack.c.l.b16 %v255
    %v554 = vunpack.c.h.b16 %v255
    %v555 = vunpack.c.l.b16 %v256
    %v556 = vunpack.c.h.b16 %v256
    %v557 = vunpack.c.l.b16 %v257
    %v558 = vunpack.c.h.b16 %v257
    %v559 = vunpack.c.l.b16 %v258
    %v560 = vunpack.c.h.b16 %v258
    %v561 = vunpack.c.l.b16 %v259
    %v562 = vunpack.c.h.b16 %v259
    %v563 = vunpack.c.l.b16 %v260
    %v564 = vunpack.c.h.b16 %v260
    %v565 = vunpack.c.l.b16 %v261
    %v566 = vunpack.c.h.b16 %v261
    %v567 = vunpack.c.l.b16 %v262
    %v568 = vunpack.c.h.b16 %v262
    %v569 = vunpack.c.l.b16 %v263
    %v570 = vunpack.c.h.b16 %v263
    %v571 = vunpack.c.l.b16 %v264
    %v572 = vunpack.c.h.b16 %v264
    %v573 = vunpack.c.l.b16 %v265
    %v574 = vunpack.c.h.b16 %v265
    %v575 = vunpack.c.l.b16 %v266
    %v576 = vunpack.c.h.b16 %v266
    %v577 = vunpack.c.l.b16 %v267
    %v578 = vunpack.c.h.b16 %v267
    %v579 = vunpack.c.l.b16 %v268
    %v580 = vunpack.c.h.b16 %v268
    %v581 = vunpack.c.l.b16 %v269
    %v582 = vunpack.c.h.b16 %v269
    %v583 = vunpack.c.l.b16 %v270
    %v584 = vunpack.c.h.b16 %v270
    %v585 = vunpack.c.l.b16 %v271
    %v586 = vunpack.c.h.b16 %v271
    %v587 = vunpack.c.l.b16 %v272
    %v588 = vunpack.c.h.b16 %v272
    %v589 = vunpack.c.l.b16 %v273
    %v590 = vunpack.c.h.b16 %v273
    %v591 = vunpack.c.l.b16 %v274
    %v592 = vunpack.c.h.b16 %v274
    %v593 = vunpack.c.l.b16 %v275
    %v594 = vunpack.c.h.b16 %v275
    %v595 = vunpack.c.l.b16 %v276
    %v596 = vunpack.c.h.b16 %v276
    %v597 = vunpack.c.l.b16 %v277
    %v598 = vunpack.c.h.b16 %v277
    %v599 = vunpack.c.l.b16 %v278
    %v600 = vunpack.c.h.b16 %v278
    %v601 = vunpack.c.l.b16 %v279
    %v602 = vunpack.c.h.b16 %v279
    %v603 = vunpack.c.l.b16 %v280
    %v604 = vunpack.c.h.b16 %v280
    %v605 = vunpack.c.l.b16 %v281
    %v606 = vunpack.c.h.b16 %v281
    %v607 = vunpack.c.l.b16 %v282
    %v608 = vunpack.c.h.b16 %v282
    %v609 = vunpack.c.l.b16 %v283
    %v610 = vunpack.c.h.b16 %v283
    %v611 = vunpack.c.l.b16 %v284
    %v612 = vunpack.c.h.b16 %v284
    %v613 = vunpack.c.l.b16 %v285
    %v614 = vunpack.c.h.b16 %v285
    %v615 = vunpack.c.l.b16 %v286
    %v616 = vunpack.c.h.b16 %v286
    %v617 = vunpack.c.l.b16 %v287
    %v618 = vunpack.c.h.b16 %v287
    %v619 = vunpack.c.l.b16 %v288
    %v620 = vunpack.c.h.b16 %v288
    %v621 = vunpack.c.l.b16 %v289
    %v622 = vunpack.c.h.b16 %v289
    %v623 = vunpack.c.l.b16 %v290
    %v624 = vunpack.c.h.b16 %v290
    %v625 = vunpack.c.l.b16 %v291
    %v626 = vunpack.c.h.b16 %v291
    %v627 = vunpack.c.l.b16 %v292
    %v628 = vunpack.c.h.b16 %v292
    %v629 = vunpack.c.l.b16 %v293
    %v630 = vunpack.c.h.b16 %v293
    %v631 = vunpack.c.l.b16 %v294
    %v632 = vunpack.c.h.b16 %v294
    %v633 = vunpack.c.l.b16 %v295
    %v634 = vunpack.c.h.b16 %v295
    %v635 = vunpack.c.l.b16 %v296
    %v636 = vunpack.c.h.b16 %v296
    %v637 = vunpack.c.l.b16 %v297
    %v638 = vunpack.c.h.b16 %v297
    %v639 = vunpack.c.l.b16 %v298
    %v640 = vunpack.c.h.b16 %v298
    %v641 = vunpack.c.l.b16 %v299
    %v642 = vunpack.c.h.b16 %v299
    %v643 = vunpack.c.l.b16 %v300
    %v644 = vunpack.c.h.b16 %v300
    %v645 = vunpack.c.l.b16 %v301
    %v646 = vunpack.c.h.b16 %v301
    %v647 = vunpack.c.l.b16 %v302
    %v648 = vunpack.c.h.b16 %v302
    %v649 = vunpack.c.l.b16 %v303
    %v650 = vunpack.c.h.b16 %v303
    %v651 = vunpack.c.l.b16 %v304
    %v652 = vunpack.c.h.b16 %v304
    %v653 = vunpack.c.l.b16 %v305
    %v654 = vunpack.c.h.b16 %v305
    %v655 = vunpack.c.l.b16 %v306
    %v656 = vunpack.c.h.b16 %v306
    %v657 = vunpack.c.l.b16 %v307
    %v658 = vunpack.c.h.b16 %v307
    %v659 = vunpack.c.l.b16 %v308
    %v660 = vunpack.c.h.b16 %v308
    %v661 = vunpack.c.l.b16 %v309
    %v662 = vunpack.c.h.b16 %v309
    %v663 = vunpack.c.l.b16 %v310
    %v664 = vunpack.c.h.b16 %v310
    %v665 = vunpack.c.l.b16 %v311
    %v666 = vunpack.c.h.b16 %v311
    %v667 = vunpack.c.l.b16 %v312
    %v668 = vunpack.c.h.b16 %v312
    %v669 = vunpack.c.l.b16 %v313
    %v670 = vunpack.c.h.b16 %v313
    %v671 = vunpack.c.l.b16 %v314
    %v672 = vunpack.c.h.b16 %v314
    %v673 = vunpack.c.l.b16 %v315
    %v674 = vunpack.c.h.b16 %v315
    %v675 = vunpack.c.l.b16 %v316
    %v676 = vunpack.c.h.b16 %v316
    %v677 = vunpack.c.l.b16 %v317
    %v678 = vunpack.c.h.b16 %v317
    %v679 = vunpack.c.l.b16 %v318
    %v680 = vunpack.c.h.b16 %v318
    %v681 = vunpack.c.l.b16 %v319
    %v682 = vunpack.c.h.b16 %v319
    %v683 = vunpack.c.l.b16 %v320
    %v684 = vunpack.c.h.b16 %v320
    %v685 = vunpack.c.l.b16 %v321
    %v686 = vunpack.c.h.b16 %v321
    %v687 = vunpack.c.l.b16 %v322
    %v688 = vunpack.c.h.b16 %v322
    %v689 = vunpack.c.l.b16 %v323
    %v690 = vunpack.c.h.b16 %v323
    %v691 = vunpack.c.l.b16 %v324
    %v692 = vunpack.c.h.b16 %v324
    %v693 = vunpack.c.l.b16 %v325
    %v694 = vunpack.c.h.b16 %v325
    %v695 = vunpack.c.l.b16 %v326
    %v696 = vunpack.c.h.b16 %v326
    %v697 = vunpack.c.l.b16 %v327
    %v698 = vunpack.c.h.b16 %v327
    %v699 = vunpack.c.l.b16 %v328
    %v700 = vunpack.c.h.b16 %v328
    %v701 = vunpack.c.l.b16 %v329
    %v702 = vunpack.c.h.b16 %v329
    %v703 = vunpack.c.l.b16 %v330
    %v704 = vunpack.c.h.b16 %v330
    %v705 = vunpack.c.l.b16 %v331
    %v706 = vunpack.c.h.b16 %v331
    %v707 = vunpack.c.l.b16 %v332
    %v708 = vunpack.c.h.b16 %v332
    %v709 = vunpack.c.l.b16 %v333
    %v710 = vunpack.c.h.b16 %v333
    %v711 = vunpack.c.l.b16 %v334
    %v712 = vunpack.c.h.b16 %v334
    %v713 = vunpack.c.l.b16 %v335
    %v714 = vunpack.c.h.b16 %v335
    %v715 = vunpack.c.l.b16 %v336
    %v716 = vunpack.c.h.b16 %v336
    %v717 = vunpack.c.l.b16 %v337
    %v718 = vunpack.c.h.b16 %v337
    %v719 = vunpack.c.l.b16 %v338
    %v720 = vunpack.c.h.b16 %v338
    %v721 = vunpack.c.l.b16 %v339
    %v722 = vunpack.c.h.b16 %v339
    %v723 = vunpack.c.l.b16 %v340
    %v724 = vunpack.c.h.b16 %v340
    %v725 = vunpack.c.l.b16 %v341
    %v726 = vunpack.c.h.b16 %v341
    %v727 = vunpack.c.l.b16 %v342
    %v728 = vunpack.c.h.b16 %v342
    %v729 = vunpack.c.l.b16 %v343
    %v730 = vunpack.c.h.b16 %v343
    %v731 = vunpack.c.l.b16 %v344
    %v732 = vunpack.c.h.b16 %v344
    %v733 = vunpack.c.l.b16 %v345
    %v734 = vunpack.c.h.b16 %v345
    %v735 = vunpack.c.l.b16 %v346
    %v736 = vunpack.c.h.b16 %v346
    %v737 = vunpack.c.l.b16 %v347
    %v738 = vunpack.c.h.b16 %v347
    %v739 = vunpack.c.l.b16 %v348
    %v740 = vunpack.c.h.b16 %v348
    %v741 = vunpack.c.l.b16 %v349
    %v742 = vunpack.c.h.b16 %v349
    %v743 = vunpack.c.l.b16 %v350
    %v744 = vunpack.c.h.b16 %v350
    %v745 = vunpack.c.l.b16 %v351
    %v746 = vunpack.c.h.b16 %v351
    %v747 = vunpack.c.l.b16 %v352
    %v748 = vunpack.c.h.b16 %v352
    %v749 = vunpack.c.l.b16 %v353
    %v750 = vunpack.c.h.b16 %v353
    %v751 = vunpack.c.l.b16 %v354
    %v752 = vunpack.c.h.b16 %v354
    %v753 = vunpack.c.l.b16 %v355
    %v754 = vunpack.c.h.b16 %v355
    %v755 = vunpack.c.l.b16 %v356
    %v756 = vunpack.c.h.b16 %v356
    %v757 = vunpack.c.l.b16 %v357
    %v758 = vunpack.c.h.b16 %v357
    %v759 = vunpack.c.l.b16 %v358
    %v760 = vunpack.c.h.b16 %v358
    %v761 = vunpack.c.l.b16 %v359
    %v762 = vunpack.c.h.b16 %v359
    %v763 = vunpack.c.l.b16 %v360
    %v764 = vunpack.c.h.b16 %v360
    %v765 = vunpack.c.l.b16 %v361
    %v766 = vunpack.c.h.b16 %v361
    %v767 = vunpack.c.l.b16 %v362
    %v768 = vunpack.c.h.b16 %v362
    %v769 = vpack.c.b16 %v517, %v513
    %v770 = vpack.c.b16 %v518, %v514
    %v771 = vpack.c.b16 %v519, %v515
    %v772 = vpack.c.b16 %v520, %v516
    %v773 = vpack.c.b16 %v525, %v521
    %v774 = vpack.c.b16 %v526, %v522
    %v775 = vpack.c.b16 %v527, %v523
    %v776 = vpack.c.b16 %v528, %v524
    %v777 = vpack.c.b16 %v533, %v529
    %v778 = vpack.c.b16 %v534, %v530
    %v779 = vpack.c.b16 %v535, %v531
    %v780 = vpack.c.b16 %v536, %v532
    %v781 = vpack.c.b16 %v541, %v537
    %v782 = vpack.c.b16 %v542, %v538
    %v783 = vpack.c.b16 %v543, %v539
    %v784 = vpack.c.b16 %v544, %v540
    %v785 = vpack.c.b16 %v549, %v545
    %v786 = vpack.c.b16 %v550, %v546
    %v787 = vpack.c.b16 %v551, %v547
    %v788 = vpack.c.b16 %v552, %v548
    %v789 = vpack.c.b16 %v557, %v553
    %v790 = vpack.c.b16 %v558, %v554
    %v791 = vpack.c.b16 %v559, %v555
    %v792 = vpack.c.b16 %v560, %v556
    %v793 = vpack.c.b16 %v565, %v561
    %v794 = vpack.c.b16 %v566, %v562
    %v795 = vpack.c.b16 %v567, %v563
    %v796 = vpack.c.b16 %v568, %v564
    %v797 = vpack.c.b16 %v573, %v569
    %v798 = vpack.c.b16 %v574, %v570
    %v799 = vpack.c.b16 %v575, %v571
    %v800 = vpack.c.b16 %v576, %v572
    %v801 = vpack.c.b16 %v581, %v577
    %v802 = vpack.c.b16 %v582, %v578
    %v803 = vpack.c.b16 %v583, %v579
    %v804 = vpack.c.b16 %v584, %v580
    %v805 = vpack.c.b16 %v589, %v585
    %v806 = vpack.c.b16 %v590, %v586
    %v807 = vpack.c.b16 %v591, %v587
    %v808 = vpack.c.b16 %v592, %v588
    %v809 = vpack.c.b16 %v597, %v593
    %v810 = vpack.c.b16 %v598, %v594
    %v811 = vpack.c.b16 %v599, %v595
    %v812 = vpack.c.b16 %v600, %v596
    %v813 = vpack.c.b16 %v605, %v601
    %v814 = vpack.c.b16 %v606, %v602
    %v815 = vpack.c.b16 %v607, %v603
    %v816 = vpack.c.b16 %v608, %v604
    %v817 = vpack.c.b16 %v613, %v609
    %v818 = vpack.c.b16 %v614, %v610
    %v819 = vpack.c.b16 %v615, %v611
    %v820 = vpack.c.b16 %v616, %v612
    %v821 = vpack.c.b16 %v621, %v617
    %v822 = vpack.c.b16 %v622, %v618
    %v823 = vpack.c.b16 %v623, %v619
    %v824 = vpack.c.b16 %v624, %v620
    %v825 = vpack.c.b16 %v629, %v625
    %v826 = vpack.c.b16 %v630, %v626
    %v827 = vpack.c.b16 %v631, %v627
    %v828 = vpack.c.b16 %v632, %v628
    %v829 = vpack.c.b16 %v637, %v633
    %v830 = vpack.c.b16 %v638, %v634
    %v831 = vpack.c.b16 %v639, %v635
    %v832 = vpack.c.b16 %v640, %v636
    %v833 = vpack.c.b16 %v645, %v641
    %v834 = vpack.c.b16 %v646, %v642
    %v835 = vpack.c.b16 %v647, %v643
    %v836 = vpack.c.b16 %v648, %v644
    %v837 = vpack.c.b16 %v653, %v649
    %v838 = vpack.c.b16 %v654, %v650
    %v839 = vpack.c.b16 %v655, %v651
    %v840 = vpack.c.b16 %v656, %v652
    %v841 = vpack.c.b16 %v661, %v657
    %v842 = vpack.c.b16 %v662, %v658
    %v843 = vpack.c.b16 %v663, %v659
    %v844 = vpack.c.b16 %v664, %v660
    %v845 = vpack.c.b16 %v669, %v665
    %v846 = vpack.c.b16 %v670, %v666
    %v847 = vpack.c.b16 %v671, %v667
    %v848 = vpack.c.b16 %v672, %v668
    %v849 = vpack.c.b16 %v677, %v673
    %v850 = vpack.c.b16 %v678, %v674
    %v851 = vpack.c.b16 %v679, %v675
    %v852 = vpack.c.b16 %v680, %v676
    %v853 = vpack.c.b16 %v685, %v681
    %v854 = vpack.c.b16 %v686, %v682
    %v855 = vpack.c.b16 %v687, %v683
    %v856 = vpack.c.b16 %v688, %v684
    %v857 = vpack.c.b16 %v693, %v689
    %v858 = vpack.c.b16 %v694, %v690
    %v859 = vpack.c.b16 %v695, %v691
    %v860 = vpack.c.b16 %v696, %v692
    %v861 = vpack.c.b16 %v701, %v697
    %v862 = vpack.c.b16 %v702, %v698
    %v863 = vpack.c.b16 %v703, %v699
    %v864 = vpack.c.b16 %v704, %v700
    %v865 = vpack.c.b16 %v709, %v705
    %v866 = vpack.c.b16 %v710, %v706
    %v867 = vpack.c.b16 %v711, %v707
    %v868 = vpack.c.b16 %v712, %v708
    %v869 = vpack.c.b16 %v717, %v713
    %v870 = vpack.c.b16 %v718, %v714
    %v871 = vpack.c.b16 %v719, %v715
    %v872 = vpack.c.b16 %v720, %v716
    %v873 = vpack.c.b16 %v725, %v721
    %v874 = vpack.c.b16 %v726, %v722
    %v875 = vpack.c.b16 %v727, %v723
    %v876 = vpack.c.b16 %v728, %v724
    %v877 = vpack.c.b16 %v733, %v729
    %v878 = vpack.c.b16 %v734, %v730
    %v879 = vpack.c.b16 %v735, %v731
    %v880 = vpack.c.b16 %v736, %v732
    %v881 = vpack.c.b16 %v741, %v737
    %v882 = vpack.c.b16 %v742, %v738
    %v883 = vpack.c.b16 %v743, %v739
    %v884 = vpack.c.b16 %v744, %v740
    %v885 = vpack.c.b16 %v749, %v745
    %v886 = vpack.c.b16 %v750, %v746
    %v887 = vpack.c.b16 %v751, %v747
    %v888 = vpack.c.b16 %v752, %v748
    %v889 = vpack.c.b16 %v757, %v753
    %v890 = vpack.c.b16 %v758, %v754
    %v891 = vpack.c.b16 %v759, %v755
    %v892 = vpack.c.b16 %v760, %v756
    %v893 = vpack.c.b16 %v765, %v761
    %v894 = vpack.c.b16 %v766, %v762
    %v895 = vpack.c.b16 %v767, %v763
    %v896 = vpack.c.b16 %v768, %v764
    %1025 = vmatprep.subr.bf16.mxu0 %v798
    %1026 = vmatpush1.bf16.msra.mxu0 %v797
    %1027 = vmatprep.subr.bf16.mxu0 %v794
    %1028 = vmatpush1.bf16.msra.mxu0 %v793
    %1029 = vmatprep.subr.bf16.mxu0 %v790
    %1030 = vmatpush1.bf16.msra.mxu0 %v789
    %1031 = vmatprep.subr.bf16.mxu0 %v786
    %1032 = vmatpush1.bf16.msra.mxu0 %v785
    %1033 = vmatprep.subr.bf16.mxu0 %v782
    %1034 = vmatpush1.bf16.msra.mxu0 %v781
    %1035 = vmatprep.subr.bf16.mxu0 %v778
    %1036 = vmatpush1.bf16.msra.mxu0 %v777
    %1037 = vmatprep.subr.bf16.mxu0 %v774
    %1038 = vmatpush1.bf16.msra.mxu0 %v773
    %1039 = vmatprep.subr.bf16.mxu0 %v770
    %1040 = vmatpush1.bf16.msra.mxu0 %v769
    %1041 = vmatprep.subr.bf16.mxu0 %v830
    %1042 = vmatpush2.bf16.msra.mxu0 %v829
    %1043 = vmatprep.subr.bf16.mxu0 %v826
    %1044 = vmatpush2.bf16.msra.mxu0 %v825
    %1045 = vmatprep.subr.bf16.mxu0 %v822
    %1046 = vmatpush2.bf16.msra.mxu0 %v821
    %1047 = vmatprep.subr.bf16.mxu0 %v818
    %1048 = vmatpush2.bf16.msra.mxu0 %v817
    %1049 = vmatprep.subr.bf16.mxu0 %v814
    %1050 = vmatpush2.bf16.msra.mxu0 %v813
    %1051 = vmatprep.subr.bf16.mxu0 %v810
    %1052 = vmatpush2.bf16.msra.mxu0 %v809
    %1053 = vmatprep.subr.bf16.mxu0 %v806
    %1054 = vmatpush2.bf16.msra.mxu0 %v805
    %1055 = vmatprep.subr.bf16.mxu0 %v802
    %1056 = vmatpush2.bf16.msra.mxu0 %v801
    %1057 = vmatprep.mubr.bf16.mxu0 %v232
    %1058 = vmatmul.mubr.bf16.gmra.mxu0 %v231
    %v1059 = vpop.f32.mrf.mxu0
    %v1060 = vadd.f32 %v368, %v1059
    %v1061 = vpop.f32.mrf.mxu0
    %v1062 = vadd.f32 %v372, %v1061
    %v1063 = vpop.f32.mrf.mxu0
    %v1064 = vadd.f32 %v368, %v1063
    %v1065 = vpop.f32.mrf.mxu0
    %v1066 = vadd.f32 %v372, %v1065
    %1067 = vdwg.mxu0
    %1068 = vmatprep.subr.bf16.mxu0 %v862
    %1069 = vmatpush1.bf16.msra.mxu0 %v861
    %1070 = vmatprep.subr.bf16.mxu0 %v858
    %1071 = vmatpush1.bf16.msra.mxu0 %v857
    %1072 = vmatprep.subr.bf16.mxu0 %v854
    %1073 = vmatpush1.bf16.msra.mxu0 %v853
    %1074 = vmatprep.subr.bf16.mxu0 %v850
    %1075 = vmatpush1.bf16.msra.mxu0 %v849
    %1076 = vmatprep.subr.bf16.mxu0 %v846
    %1077 = vmatpush1.bf16.msra.mxu0 %v845
    %1078 = vmatprep.subr.bf16.mxu0 %v842
    %1079 = vmatpush1.bf16.msra.mxu0 %v841
    %1080 = vmatprep.subr.bf16.mxu0 %v838
    %1081 = vmatpush1.bf16.msra.mxu0 %v837
    %1082 = vmatprep.subr.bf16.mxu0 %v834
    %1083 = vmatpush1.bf16.msra.mxu0 %v833
    %1084 = vmatprep.subr.bf16.mxu0 %v894
    %1085 = vmatpush2.bf16.msra.mxu0 %v893
    %1086 = vmatprep.subr.bf16.mxu0 %v890
    %1087 = vmatpush2.bf16.msra.mxu0 %v889
    %1088 = vmatprep.subr.bf16.mxu0 %v886
    %1089 = vmatpush2.bf16.msra.mxu0 %v885
    %1090 = vmatprep.subr.bf16.mxu0 %v882
    %1091 = vmatpush2.bf16.msra.mxu0 %v881
    %1092 = vmatprep.subr.bf16.mxu0 %v878
    %1093 = vmatpush2.bf16.msra.mxu0 %v877
    %1094 = vmatprep.subr.bf16.mxu0 %v874
    %1095 = vmatpush2.bf16.msra.mxu0 %v873
    %1096 = vmatprep.subr.bf16.mxu0 %v870
    %1097 = vmatpush2.bf16.msra.mxu0 %v869
    %1098 = vmatprep.subr.bf16.mxu0 %v866
    %1099 = vmatpush2.bf16.msra.mxu0 %v865
    %1100 = vmatprep.mubr.bf16.mxu0 %v234
    %1101 = vmatmul.mubr.bf16.gmra.mxu0 %v233
    %v1102 = vpop.f32.mrf.mxu0
    %v1103 = vadd.f32 %v1060, %v1102
    %v1104 = vpop.f32.mrf.mxu0
    %v1105 = vadd.f32 %v1062, %v1104
    %v1106 = vpop.f32.mrf.mxu0
    %v1107 = vadd.f32 %v1064, %v1106
    %v1108 = vpop.f32.mrf.mxu0
    %v1109 = vadd.f32 %v1066, %v1108
    %1110 = vdwg.mxu0
    %1111 = vmatprep.subr.bf16.mxu0 %v800
    %1112 = vmatpush1.bf16.msra.mxu0 %v799
    %1113 = vmatprep.subr.bf16.mxu0 %v796
    %1114 = vmatpush1.bf16.msra.mxu0 %v795
    %1115 = vmatprep.subr.bf16.mxu0 %v792
    %1116 = vmatpush1.bf16.msra.mxu0 %v791
    %1117 = vmatprep.subr.bf16.mxu0 %v788
    %1118 = vmatpush1.bf16.msra.mxu0 %v787
    %1119 = vmatprep.subr.bf16.mxu0 %v784
    %1120 = vmatpush1.bf16.msra.mxu0 %v783
    %1121 = vmatprep.subr.bf16.mxu0 %v780
    %1122 = vmatpush1.bf16.msra.mxu0 %v779
    %1123 = vmatprep.subr.bf16.mxu0 %v776
    %1124 = vmatpush1.bf16.msra.mxu0 %v775
    %1125 = vmatprep.subr.bf16.mxu0 %v772
    %1126 = vmatpush1.bf16.msra.mxu0 %v771
    %1127 = vmatprep.subr.bf16.mxu0 %v832
    %1128 = vmatpush2.bf16.msra.mxu0 %v831
    %1129 = vmatprep.subr.bf16.mxu0 %v828
    %1130 = vmatpush2.bf16.msra.mxu0 %v827
    %1131 = vmatprep.subr.bf16.mxu0 %v824
    %1132 = vmatpush2.bf16.msra.mxu0 %v823
    %1133 = vmatprep.subr.bf16.mxu0 %v820
    %1134 = vmatpush2.bf16.msra.mxu0 %v819
    %1135 = vmatprep.subr.bf16.mxu0 %v816
    %1136 = vmatpush2.bf16.msra.mxu0 %v815
    %1137 = vmatprep.subr.bf16.mxu0 %v812
    %1138 = vmatpush2.bf16.msra.mxu0 %v811
    %1139 = vmatprep.subr.bf16.mxu0 %v808
    %1140 = vmatpush2.bf16.msra.mxu0 %v807
    %1141 = vmatprep.subr.bf16.mxu0 %v804
    %1142 = vmatpush2.bf16.msra.mxu0 %v803
    %1143 = vmatprep.mubr.bf16.mxu0 %v232
    %1144 = vmatmul.mubr.bf16.gmra.mxu0 %v231
    %v1145 = vpop.f32.mrf.mxu0
    %v1146 = vadd.f32 %v376, %v1145
    %v1147 = vpop.f32.mrf.mxu0
    %v1148 = vadd.f32 %v380, %v1147
    %v1149 = vpop.f32.mrf.mxu0
    %v1150 = vadd.f32 %v376, %v1149
    %v1151 = vpop.f32.mrf.mxu0
    %v1152 = vadd.f32 %v380, %v1151
    %1153 = vdwg.mxu0
    %1154 = vmatprep.subr.bf16.mxu0 %v864
    %1155 = vmatpush1.bf16.msra.mxu0 %v863
    %1156 = vmatprep.subr.bf16.mxu0 %v860
    %1157 = vmatpush1.bf16.msra.mxu0 %v859
    %1158 = vmatprep.subr.bf16.mxu0 %v856
    %1159 = vmatpush1.bf16.msra.mxu0 %v855
    %1160 = vmatprep.subr.bf16.mxu0 %v852
    %1161 = vmatpush1.bf16.msra.mxu0 %v851
    %1162 = vmatprep.subr.bf16.mxu0 %v848
    %1163 = vmatpush1.bf16.msra.mxu0 %v847
    %1164 = vmatprep.subr.bf16.mxu0 %v844
    %1165 = vmatpush1.bf16.msra.mxu0 %v843
    %1166 = vmatprep.subr.bf16.mxu0 %v840
    %1167 = vmatpush1.bf16.msra.mxu0 %v839
    %1168 = vmatprep.subr.bf16.mxu0 %v836
    %1169 = vmatpush1.bf16.msra.mxu0 %v835
    %1170 = vmatprep.subr.bf16.mxu0 %v896
    %1171 = vmatpush2.bf16.msra.mxu0 %v895
    %1172 = vmatprep.subr.bf16.mxu0 %v892
    %1173 = vmatpush2.bf16.msra.mxu0 %v891
    %1174 = vmatprep.subr.bf16.mxu0 %v888
    %1175 = vmatpush2.bf16.msra.mxu0 %v887
    %1176 = vmatprep.subr.bf16.mxu0 %v884
    %1177 = vmatpush2.bf16.msra.mxu0 %v883
    %1178 = vmatprep.subr.bf16.mxu0 %v880
    %1179 = vmatpush2.bf16.msra.mxu0 %v879
    %1180 = vmatprep.subr.bf16.mxu0 %v876
    %1181 = vmatpush2.bf16.msra.mxu0 %v875
    %1182 = vmatprep.subr.bf16.mxu0 %v872
    %1183 = vmatpush2.bf16.msra.mxu0 %v871
    %1184 = vmatprep.subr.bf16.mxu0 %v868
    %1185 = vmatpush2.bf16.msra.mxu0 %v867
    %1186 = vmatprep.mubr.bf16.mxu0 %v234
    %1187 = vmatmul.mubr.bf16.gmra.mxu0 %v233
    %v1188 = vpop.f32.mrf.mxu0
    %v1189 = vadd.f32 %v1146, %v1188
    %v1190 = vpop.f32.mrf.mxu0
    %v1191 = vadd.f32 %v1148, %v1190
    %v1192 = vpop.f32.mrf.mxu0
    %v1193 = vadd.f32 %v1150, %v1192
    %v1194 = vpop.f32.mrf.mxu0
    %v1195 = vadd.f32 %v1152, %v1194
    %1196 = vdwg.mxu0
    %v1197 = vmax.f32 %v1103, 0.0
    %v1198 = vmax.f32 %v1105, 0.0
    %v1199 = vmax.f32 %v1189, 0.0
    %v1200 = vmax.f32 %v1191, 0.0
    %v1201 = vmax.f32 %v1107, 0.0
    %v1202 = vmax.f32 %v1109, 0.0
    %v1203 = vmax.f32 %v1193, 0.0
    %v1204 = vmax.f32 %v1195, 0.0
    %v1205 = vpack.c.bf16 %v1201, %v1197
    %v1206 = vpack.c.bf16 %v1202, %v1198
    %v1207 = vpack.c.bf16 %v1203, %v1199
    %v1208 = vpack.c.bf16 %v1204, %v1200
    %v1209 = vld [vmem:[#allocation5] sm:$0xff]
    %v1210 = vld [vmem:[#allocation5 + $0x8] sm:$0xff]
    %v1211 = vld [vmem:[#allocation5 + $0x10] sm:$0xff]
    %v1212 = vld [vmem:[#allocation5 + $0x18] sm:$0xff]
    %v1213 = vld [vmem:[#allocation5 + $0x20] sm:$0xff]
    %v1214 = vld [vmem:[#allocation5 + $0x28] sm:$0xff]
    %v1215 = vld [vmem:[#allocation5 + $0x30] sm:$0xff]
    %v1216 = vld [vmem:[#allocation5 + $0x38] sm:$0xff]
    %v1217 = vld [vmem:[#allocation5 + $0x40] sm:$0xff]
    %v1218 = vld [vmem:[#allocation5 + $0x48] sm:$0xff]
    %v1219 = vld [vmem:[#allocation5 + $0x50] sm:$0xff]
    %v1220 = vld [vmem:[#allocation5 + $0x58] sm:$0xff]
    %v1221 = vld [vmem:[#allocation5 + $0x60] sm:$0xff]
    %v1222 = vld [vmem:[#allocation5 + $0x68] sm:$0xff]
    %v1223 = vld [vmem:[#allocation5 + $0x70] sm:$0xff]
    %v1224 = vld [vmem:[#allocation5 + $0x78] sm:$0xff]
    %v1225 = vld [vmem:[#allocation5 + $0x80] sm:$0xff]
    %v1226 = vld [vmem:[#allocation5 + $0x88] sm:$0xff]
    %v1227 = vld [vmem:[#allocation5 + $0x90] sm:$0xff]
    %v1228 = vld [vmem:[#allocation5 + $0x98] sm:$0xff]
    %v1229 = vld [vmem:[#allocation5 + $0xa0] sm:$0xff]
    %v1230 = vld [vmem:[#allocation5 + $0xa8] sm:$0xff]
    %v1231 = vld [vmem:[#allocation5 + $0xb0] sm:$0xff]
    %v1232 = vld [vmem:[#allocation5 + $0xb8] sm:$0xff]
    %v1233 = vld [vmem:[#allocation5 + $0xc0] sm:$0xff]
    %v1234 = vld [vmem:[#allocation5 + $0xc8] sm:$0xff]
    %v1235 = vld [vmem:[#allocation5 + $0xd0] sm:$0xff]
    %v1236 = vld [vmem:[#allocation5 + $0xd8] sm:$0xff]
    %v1237 = vld [vmem:[#allocation5 + $0xe0] sm:$0xff]
    %v1238 = vld [vmem:[#allocation5 + $0xe8] sm:$0xff]
    %v1239 = vld [vmem:[#allocation5 + $0xf0] sm:$0xff]
    %v1240 = vld [vmem:[#allocation5 + $0xf8] sm:$0xff]
    %v1241 = vld [vmem:[#allocation5 + $0x100] sm:$0xff]
    %v1242 = vld [vmem:[#allocation5 + $0x108] sm:$0xff]
    %v1243 = vld [vmem:[#allocation5 + $0x110] sm:$0xff]
    %v1244 = vld [vmem:[#allocation5 + $0x118] sm:$0xff]
    %v1245 = vld [vmem:[#allocation5 + $0x120] sm:$0xff]
    %v1246 = vld [vmem:[#allocation5 + $0x128] sm:$0xff]
    %v1247 = vld [vmem:[#allocation5 + $0x130] sm:$0xff]
    %v1248 = vld [vmem:[#allocation5 + $0x138] sm:$0xff]
    %v1249 = vld [vmem:[#allocation5 + $0x140] sm:$0xff]
    %v1250 = vld [vmem:[#allocation5 + $0x148] sm:$0xff]
    %v1251 = vld [vmem:[#allocation5 + $0x150] sm:$0xff]
    %v1252 = vld [vmem:[#allocation5 + $0x158] sm:$0xff]
    %v1253 = vld [vmem:[#allocation5 + $0x160] sm:$0xff]
    %v1254 = vld [vmem:[#allocation5 + $0x168] sm:$0xff]
    %v1255 = vld [vmem:[#allocation5 + $0x170] sm:$0xff]
    %v1256 = vld [vmem:[#allocation5 + $0x178] sm:$0xff]
    %v1257 = vld [vmem:[#allocation5 + $0x180] sm:$0xff]
    %v1258 = vld [vmem:[#allocation5 + $0x188] sm:$0xff]
    %v1259 = vld [vmem:[#allocation5 + $0x190] sm:$0xff]
    %v1260 = vld [vmem:[#allocation5 + $0x198] sm:$0xff]
    %v1261 = vld [vmem:[#allocation5 + $0x1a0] sm:$0xff]
    %v1262 = vld [vmem:[#allocation5 + $0x1a8] sm:$0xff]
    %v1263 = vld [vmem:[#allocation5 + $0x1b0] sm:$0xff]
    %v1264 = vld [vmem:[#allocation5 + $0x1b8] sm:$0xff]
    %v1265 = vld [vmem:[#allocation5 + $0x1c0] sm:$0xff]
    %v1266 = vld [vmem:[#allocation5 + $0x1c8] sm:$0xff]
    %v1267 = vld [vmem:[#allocation5 + $0x1d0] sm:$0xff]
    %v1268 = vld [vmem:[#allocation5 + $0x1d8] sm:$0xff]
    %v1269 = vld [vmem:[#allocation5 + $0x1e0] sm:$0xff]
    %v1270 = vld [vmem:[#allocation5 + $0x1e8] sm:$0xff]
    %v1271 = vld [vmem:[#allocation5 + $0x1f0] sm:$0xff]
    %v1272 = vld [vmem:[#allocation5 + $0x1f8] sm:$0xff]
    %v1273 = vld [vmem:[#allocation5 + $0x200] sm:$0xff]
    %v1274 = vld [vmem:[#allocation5 + $0x208] sm:$0xff]
    %v1275 = vld [vmem:[#allocation5 + $0x210] sm:$0xff]
    %v1276 = vld [vmem:[#allocation5 + $0x218] sm:$0xff]
    %v1277 = vld [vmem:[#allocation5 + $0x220] sm:$0xff]
    %v1278 = vld [vmem:[#allocation5 + $0x228] sm:$0xff]
    %v1279 = vld [vmem:[#allocation5 + $0x230] sm:$0xff]
    %v1280 = vld [vmem:[#allocation5 + $0x238] sm:$0xff]
    %v1281 = vld [vmem:[#allocation5 + $0x240] sm:$0xff]
    %v1282 = vld [vmem:[#allocation5 + $0x248] sm:$0xff]
    %v1283 = vld [vmem:[#allocation5 + $0x250] sm:$0xff]
    %v1284 = vld [vmem:[#allocation5 + $0x258] sm:$0xff]
    %v1285 = vld [vmem:[#allocation5 + $0x260] sm:$0xff]
    %v1286 = vld [vmem:[#allocation5 + $0x268] sm:$0xff]
    %v1287 = vld [vmem:[#allocation5 + $0x270] sm:$0xff]
    %v1288 = vld [vmem:[#allocation5 + $0x278] sm:$0xff]
    %v1289 = vld [vmem:[#allocation5 + $0x280] sm:$0xff]
    %v1290 = vld [vmem:[#allocation5 + $0x288] sm:$0xff]
    %v1291 = vld [vmem:[#allocation5 + $0x290] sm:$0xff]
    %v1292 = vld [vmem:[#allocation5 + $0x298] sm:$0xff]
    %v1293 = vld [vmem:[#allocation5 + $0x2a0] sm:$0xff]
    %v1294 = vld [vmem:[#allocation5 + $0x2a8] sm:$0xff]
    %v1295 = vld [vmem:[#allocation5 + $0x2b0] sm:$0xff]
    %v1296 = vld [vmem:[#allocation5 + $0x2b8] sm:$0xff]
    %v1297 = vld [vmem:[#allocation5 + $0x2c0] sm:$0xff]
    %v1298 = vld [vmem:[#allocation5 + $0x2c8] sm:$0xff]
    %v1299 = vld [vmem:[#allocation5 + $0x2d0] sm:$0xff]
    %v1300 = vld [vmem:[#allocation5 + $0x2d8] sm:$0xff]
    %v1301 = vld [vmem:[#allocation5 + $0x2e0] sm:$0xff]
    %v1302 = vld [vmem:[#allocation5 + $0x2e8] sm:$0xff]
    %v1303 = vld [vmem:[#allocation5 + $0x2f0] sm:$0xff]
    %v1304 = vld [vmem:[#allocation5 + $0x2f8] sm:$0xff]
    %v1305 = vld [vmem:[#allocation5 + $0x300] sm:$0xff]
    %v1306 = vld [vmem:[#allocation5 + $0x308] sm:$0xff]
    %v1307 = vld [vmem:[#allocation5 + $0x310] sm:$0xff]
    %v1308 = vld [vmem:[#allocation5 + $0x318] sm:$0xff]
    %v1309 = vld [vmem:[#allocation5 + $0x320] sm:$0xff]
    %v1310 = vld [vmem:[#allocation5 + $0x328] sm:$0xff]
    %v1311 = vld [vmem:[#allocation5 + $0x330] sm:$0xff]
    %v1312 = vld [vmem:[#allocation5 + $0x338] sm:$0xff]
    %v1313 = vld [vmem:[#allocation5 + $0x340] sm:$0xff]
    %v1314 = vld [vmem:[#allocation5 + $0x348] sm:$0xff]
    %v1315 = vld [vmem:[#allocation5 + $0x350] sm:$0xff]
    %v1316 = vld [vmem:[#allocation5 + $0x358] sm:$0xff]
    %v1317 = vld [vmem:[#allocation5 + $0x360] sm:$0xff]
    %v1318 = vld [vmem:[#allocation5 + $0x368] sm:$0xff]
    %v1319 = vld [vmem:[#allocation5 + $0x370] sm:$0xff]
    %v1320 = vld [vmem:[#allocation5 + $0x378] sm:$0xff]
    %v1321 = vld [vmem:[#allocation5 + $0x380] sm:$0xff]
    %v1322 = vld [vmem:[#allocation5 + $0x388] sm:$0xff]
    %v1323 = vld [vmem:[#allocation5 + $0x390] sm:$0xff]
    %v1324 = vld [vmem:[#allocation5 + $0x398] sm:$0xff]
    %v1325 = vld [vmem:[#allocation5 + $0x3a0] sm:$0xff]
    %v1326 = vld [vmem:[#allocation5 + $0x3a8] sm:$0xff]
    %v1327 = vld [vmem:[#allocation5 + $0x3b0] sm:$0xff]
    %v1328 = vld [vmem:[#allocation5 + $0x3b8] sm:$0xff]
    %v1329 = vld [vmem:[#allocation5 + $0x3c0] sm:$0xff]
    %v1330 = vld [vmem:[#allocation5 + $0x3c8] sm:$0xff]
    %v1331 = vld [vmem:[#allocation5 + $0x3d0] sm:$0xff]
    %v1332 = vld [vmem:[#allocation5 + $0x3d8] sm:$0xff]
    %v1333 = vld [vmem:[#allocation5 + $0x3e0] sm:$0xff]
    %v1334 = vld [vmem:[#allocation5 + $0x3e8] sm:$0xff]
    %v1335 = vld [vmem:[#allocation5 + $0x3f0] sm:$0xff]
    %v1336 = vld [vmem:[#allocation5 + $0x3f8] sm:$0xff]
    %v1337 = vld [vmem:[%s6] sm:$0xf]
    %v1339 = vlaneseq
    %v1340 = vshrl.u32 %v1339, 7
    %v1341 = vsub.s32 0, %v1340
    %v1342 = vrot.slane %v1337, %v1341
    %v1343 = vlaneseq
    %v1344 = vshrl.u32 %v1343, 7
    %v1345 = vsub.s32 1, %v1344
    %v1346 = vrot.slane %v1337, %v1345
    %v1347 = vlaneseq
    %v1348 = vshrl.u32 %v1347, 7
    %v1349 = vsub.s32 2, %v1348
    %v1350 = vrot.slane %v1337, %v1349
    %v1351 = vlaneseq
    %v1352 = vshrl.u32 %v1351, 7
    %v1353 = vsub.s32 3, %v1352
    %v1354 = vrot.slane %v1337, %v1353
    %v1487 = vunpack.c.l.b16 %v1209
    %v1488 = vunpack.c.h.b16 %v1209
    %v1489 = vunpack.c.l.b16 %v1210
    %v1490 = vunpack.c.h.b16 %v1210
    %v1491 = vunpack.c.l.b16 %v1211
    %v1492 = vunpack.c.h.b16 %v1211
    %v1493 = vunpack.c.l.b16 %v1212
    %v1494 = vunpack.c.h.b16 %v1212
    %v1495 = vunpack.c.l.b16 %v1213
    %v1496 = vunpack.c.h.b16 %v1213
    %v1497 = vunpack.c.l.b16 %v1214
    %v1498 = vunpack.c.h.b16 %v1214
    %v1499 = vunpack.c.l.b16 %v1215
    %v1500 = vunpack.c.h.b16 %v1215
    %v1501 = vunpack.c.l.b16 %v1216
    %v1502 = vunpack.c.h.b16 %v1216
    %v1503 = vunpack.c.l.b16 %v1217
    %v1504 = vunpack.c.h.b16 %v1217
    %v1505 = vunpack.c.l.b16 %v1218
    %v1506 = vunpack.c.h.b16 %v1218
    %v1507 = vunpack.c.l.b16 %v1219
    %v1508 = vunpack.c.h.b16 %v1219
    %v1509 = vunpack.c.l.b16 %v1220
    %v1510 = vunpack.c.h.b16 %v1220
    %v1511 = vunpack.c.l.b16 %v1221
    %v1512 = vunpack.c.h.b16 %v1221
    %v1513 = vunpack.c.l.b16 %v1222
    %v1514 = vunpack.c.h.b16 %v1222
    %v1515 = vunpack.c.l.b16 %v1223
    %v1516 = vunpack.c.h.b16 %v1223
    %v1517 = vunpack.c.l.b16 %v1224
    %v1518 = vunpack.c.h.b16 %v1224
    %v1519 = vunpack.c.l.b16 %v1225
    %v1520 = vunpack.c.h.b16 %v1225
    %v1521 = vunpack.c.l.b16 %v1226
    %v1522 = vunpack.c.h.b16 %v1226
    %v1523 = vunpack.c.l.b16 %v1227
    %v1524 = vunpack.c.h.b16 %v1227
    %v1525 = vunpack.c.l.b16 %v1228
    %v1526 = vunpack.c.h.b16 %v1228
    %v1527 = vunpack.c.l.b16 %v1229
    %v1528 = vunpack.c.h.b16 %v1229
    %v1529 = vunpack.c.l.b16 %v1230
    %v1530 = vunpack.c.h.b16 %v1230
    %v1531 = vunpack.c.l.b16 %v1231
    %v1532 = vunpack.c.h.b16 %v1231
    %v1533 = vunpack.c.l.b16 %v1232
    %v1534 = vunpack.c.h.b16 %v1232
    %v1535 = vunpack.c.l.b16 %v1233
    %v1536 = vunpack.c.h.b16 %v1233
    %v1537 = vunpack.c.l.b16 %v1234
    %v1538 = vunpack.c.h.b16 %v1234
    %v1539 = vunpack.c.l.b16 %v1235
    %v1540 = vunpack.c.h.b16 %v1235
    %v1541 = vunpack.c.l.b16 %v1236
    %v1542 = vunpack.c.h.b16 %v1236
    %v1543 = vunpack.c.l.b16 %v1237
    %v1544 = vunpack.c.h.b16 %v1237
    %v1545 = vunpack.c.l.b16 %v1238
    %v1546 = vunpack.c.h.b16 %v1238
    %v1547 = vunpack.c.l.b16 %v1239
    %v1548 = vunpack.c.h.b16 %v1239
    %v1549 = vunpack.c.l.b16 %v1240
    %v1550 = vunpack.c.h.b16 %v1240
    %v1551 = vunpack.c.l.b16 %v1241
    %v1552 = vunpack.c.h.b16 %v1241
    %v1553 = vunpack.c.l.b16 %v1242
    %v1554 = vunpack.c.h.b16 %v1242
    %v1555 = vunpack.c.l.b16 %v1243
    %v1556 = vunpack.c.h.b16 %v1243
    %v1557 = vunpack.c.l.b16 %v1244
    %v1558 = vunpack.c.h.b16 %v1244
    %v1559 = vunpack.c.l.b16 %v1245
    %v1560 = vunpack.c.h.b16 %v1245
    %v1561 = vunpack.c.l.b16 %v1246
    %v1562 = vunpack.c.h.b16 %v1246
    %v1563 = vunpack.c.l.b16 %v1247
    %v1564 = vunpack.c.h.b16 %v1247
    %v1565 = vunpack.c.l.b16 %v1248
    %v1566 = vunpack.c.h.b16 %v1248
    %v1567 = vunpack.c.l.b16 %v1249
    %v1568 = vunpack.c.h.b16 %v1249
    %v1569 = vunpack.c.l.b16 %v1250
    %v1570 = vunpack.c.h.b16 %v1250
    %v1571 = vunpack.c.l.b16 %v1251
    %v1572 = vunpack.c.h.b16 %v1251
    %v1573 = vunpack.c.l.b16 %v1252
    %v1574 = vunpack.c.h.b16 %v1252
    %v1575 = vunpack.c.l.b16 %v1253
    %v1576 = vunpack.c.h.b16 %v1253
    %v1577 = vunpack.c.l.b16 %v1254
    %v1578 = vunpack.c.h.b16 %v1254
    %v1579 = vunpack.c.l.b16 %v1255
    %v1580 = vunpack.c.h.b16 %v1255
    %v1581 = vunpack.c.l.b16 %v1256
    %v1582 = vunpack.c.h.b16 %v1256
    %v1583 = vunpack.c.l.b16 %v1257
    %v1584 = vunpack.c.h.b16 %v1257
    %v1585 = vunpack.c.l.b16 %v1258
    %v1586 = vunpack.c.h.b16 %v1258
    %v1587 = vunpack.c.l.b16 %v1259
    %v1588 = vunpack.c.h.b16 %v1259
    %v1589 = vunpack.c.l.b16 %v1260
    %v1590 = vunpack.c.h.b16 %v1260
    %v1591 = vunpack.c.l.b16 %v1261
    %v1592 = vunpack.c.h.b16 %v1261
    %v1593 = vunpack.c.l.b16 %v1262
    %v1594 = vunpack.c.h.b16 %v1262
    %v1595 = vunpack.c.l.b16 %v1263
    %v1596 = vunpack.c.h.b16 %v1263
    %v1597 = vunpack.c.l.b16 %v1264
    %v1598 = vunpack.c.h.b16 %v1264
    %v1599 = vunpack.c.l.b16 %v1265
    %v1600 = vunpack.c.h.b16 %v1265
    %v1601 = vunpack.c.l.b16 %v1266
    %v1602 = vunpack.c.h.b16 %v1266
    %v1603 = vunpack.c.l.b16 %v1267
    %v1604 = vunpack.c.h.b16 %v1267
    %v1605 = vunpack.c.l.b16 %v1268
    %v1606 = vunpack.c.h.b16 %v1268
    %v1607 = vunpack.c.l.b16 %v1269
    %v1608 = vunpack.c.h.b16 %v1269
    %v1609 = vunpack.c.l.b16 %v1270
    %v1610 = vunpack.c.h.b16 %v1270
    %v1611 = vunpack.c.l.b16 %v1271
    %v1612 = vunpack.c.h.b16 %v1271
    %v1613 = vunpack.c.l.b16 %v1272
    %v1614 = vunpack.c.h.b16 %v1272
    %v1615 = vunpack.c.l.b16 %v1273
    %v1616 = vunpack.c.h.b16 %v1273
    %v1617 = vunpack.c.l.b16 %v1274
    %v1618 = vunpack.c.h.b16 %v1274
    %v1619 = vunpack.c.l.b16 %v1275
    %v1620 = vunpack.c.h.b16 %v1275
    %v1621 = vunpack.c.l.b16 %v1276
    %v1622 = vunpack.c.h.b16 %v1276
    %v1623 = vunpack.c.l.b16 %v1277
    %v1624 = vunpack.c.h.b16 %v1277
    %v1625 = vunpack.c.l.b16 %v1278
    %v1626 = vunpack.c.h.b16 %v1278
    %v1627 = vunpack.c.l.b16 %v1279
    %v1628 = vunpack.c.h.b16 %v1279
    %v1629 = vunpack.c.l.b16 %v1280
    %v1630 = vunpack.c.h.b16 %v1280
    %v1631 = vunpack.c.l.b16 %v1281
    %v1632 = vunpack.c.h.b16 %v1281
    %v1633 = vunpack.c.l.b16 %v1282
    %v1634 = vunpack.c.h.b16 %v1282
    %v1635 = vunpack.c.l.b16 %v1283
    %v1636 = vunpack.c.h.b16 %v1283
    %v1637 = vunpack.c.l.b16 %v1284
    %v1638 = vunpack.c.h.b16 %v1284
    %v1639 = vunpack.c.l.b16 %v1285
    %v1640 = vunpack.c.h.b16 %v1285
    %v1641 = vunpack.c.l.b16 %v1286
    %v1642 = vunpack.c.h.b16 %v1286
    %v1643 = vunpack.c.l.b16 %v1287
    %v1644 = vunpack.c.h.b16 %v1287
    %v1645 = vunpack.c.l.b16 %v1288
    %v1646 = vunpack.c.h.b16 %v1288
    %v1647 = vunpack.c.l.b16 %v1289
    %v1648 = vunpack.c.h.b16 %v1289
    %v1649 = vunpack.c.l.b16 %v1290
    %v1650 = vunpack.c.h.b16 %v1290
    %v1651 = vunpack.c.l.b16 %v1291
    %v1652 = vunpack.c.h.b16 %v1291
    %v1653 = vunpack.c.l.b16 %v1292
    %v1654 = vunpack.c.h.b16 %v1292
    %v1655 = vunpack.c.l.b16 %v1293
    %v1656 = vunpack.c.h.b16 %v1293
    %v1657 = vunpack.c.l.b16 %v1294
    %v1658 = vunpack.c.h.b16 %v1294
    %v1659 = vunpack.c.l.b16 %v1295
    %v1660 = vunpack.c.h.b16 %v1295
    %v1661 = vunpack.c.l.b16 %v1296
    %v1662 = vunpack.c.h.b16 %v1296
    %v1663 = vunpack.c.l.b16 %v1297
    %v1664 = vunpack.c.h.b16 %v1297
    %v1665 = vunpack.c.l.b16 %v1298
    %v1666 = vunpack.c.h.b16 %v1298
    %v1667 = vunpack.c.l.b16 %v1299
    %v1668 = vunpack.c.h.b16 %v1299
    %v1669 = vunpack.c.l.b16 %v1300
    %v1670 = vunpack.c.h.b16 %v1300
    %v1671 = vunpack.c.l.b16 %v1301
    %v1672 = vunpack.c.h.b16 %v1301
    %v1673 = vunpack.c.l.b16 %v1302
    %v1674 = vunpack.c.h.b16 %v1302
    %v1675 = vunpack.c.l.b16 %v1303
    %v1676 = vunpack.c.h.b16 %v1303
    %v1677 = vunpack.c.l.b16 %v1304
    %v1678 = vunpack.c.h.b16 %v1304
    %v1679 = vunpack.c.l.b16 %v1305
    %v1680 = vunpack.c.h.b16 %v1305
    %v1681 = vunpack.c.l.b16 %v1306
    %v1682 = vunpack.c.h.b16 %v1306
    %v1683 = vunpack.c.l.b16 %v1307
    %v1684 = vunpack.c.h.b16 %v1307
    %v1685 = vunpack.c.l.b16 %v1308
    %v1686 = vunpack.c.h.b16 %v1308
    %v1687 = vunpack.c.l.b16 %v1309
    %v1688 = vunpack.c.h.b16 %v1309
    %v1689 = vunpack.c.l.b16 %v1310
    %v1690 = vunpack.c.h.b16 %v1310
    %v1691 = vunpack.c.l.b16 %v1311
    %v1692 = vunpack.c.h.b16 %v1311
    %v1693 = vunpack.c.l.b16 %v1312
    %v1694 = vunpack.c.h.b16 %v1312
    %v1695 = vunpack.c.l.b16 %v1313
    %v1696 = vunpack.c.h.b16 %v1313
    %v1697 = vunpack.c.l.b16 %v1314
    %v1698 = vunpack.c.h.b16 %v1314
    %v1699 = vunpack.c.l.b16 %v1315
    %v1700 = vunpack.c.h.b16 %v1315
    %v1701 = vunpack.c.l.b16 %v1316
    %v1702 = vunpack.c.h.b16 %v1316
    %v1703 = vunpack.c.l.b16 %v1317
    %v1704 = vunpack.c.h.b16 %v1317
    %v1705 = vunpack.c.l.b16 %v1318
    %v1706 = vunpack.c.h.b16 %v1318
    %v1707 = vunpack.c.l.b16 %v1319
    %v1708 = vunpack.c.h.b16 %v1319
    %v1709 = vunpack.c.l.b16 %v1320
    %v1710 = vunpack.c.h.b16 %v1320
    %v1711 = vunpack.c.l.b16 %v1321
    %v1712 = vunpack.c.h.b16 %v1321
    %v1713 = vunpack.c.l.b16 %v1322
    %v1714 = vunpack.c.h.b16 %v1322
    %v1715 = vunpack.c.l.b16 %v1323
    %v1716 = vunpack.c.h.b16 %v1323
    %v1717 = vunpack.c.l.b16 %v1324
    %v1718 = vunpack.c.h.b16 %v1324
    %v1719 = vunpack.c.l.b16 %v1325
    %v1720 = vunpack.c.h.b16 %v1325
    %v1721 = vunpack.c.l.b16 %v1326
    %v1722 = vunpack.c.h.b16 %v1326
    %v1723 = vunpack.c.l.b16 %v1327
    %v1724 = vunpack.c.h.b16 %v1327
    %v1725 = vunpack.c.l.b16 %v1328
    %v1726 = vunpack.c.h.b16 %v1328
    %v1727 = vunpack.c.l.b16 %v1329
    %v1728 = vunpack.c.h.b16 %v1329
    %v1729 = vunpack.c.l.b16 %v1330
    %v1730 = vunpack.c.h.b16 %v1330
    %v1731 = vunpack.c.l.b16 %v1331
    %v1732 = vunpack.c.h.b16 %v1331
    %v1733 = vunpack.c.l.b16 %v1332
    %v1734 = vunpack.c.h.b16 %v1332
    %v1735 = vunpack.c.l.b16 %v1333
    %v1736 = vunpack.c.h.b16 %v1333
    %v1737 = vunpack.c.l.b16 %v1334
    %v1738 = vunpack.c.h.b16 %v1334
    %v1739 = vunpack.c.l.b16 %v1335
    %v1740 = vunpack.c.h.b16 %v1335
    %v1741 = vunpack.c.l.b16 %v1336
    %v1742 = vunpack.c.h.b16 %v1336
    %v1743 = vpack.c.b16 %v1491, %v1487
    %v1744 = vpack.c.b16 %v1492, %v1488
    %v1745 = vpack.c.b16 %v1493, %v1489
    %v1746 = vpack.c.b16 %v1494, %v1490
    %v1747 = vpack.c.b16 %v1499, %v1495
    %v1748 = vpack.c.b16 %v1500, %v1496
    %v1749 = vpack.c.b16 %v1501, %v1497
    %v1750 = vpack.c.b16 %v1502, %v1498
    %v1751 = vpack.c.b16 %v1507, %v1503
    %v1752 = vpack.c.b16 %v1508, %v1504
    %v1753 = vpack.c.b16 %v1509, %v1505
    %v1754 = vpack.c.b16 %v1510, %v1506
    %v1755 = vpack.c.b16 %v1515, %v1511
    %v1756 = vpack.c.b16 %v1516, %v1512
    %v1757 = vpack.c.b16 %v1517, %v1513
    %v1758 = vpack.c.b16 %v1518, %v1514
    %v1759 = vpack.c.b16 %v1523, %v1519
    %v1760 = vpack.c.b16 %v1524, %v1520
    %v1761 = vpack.c.b16 %v1525, %v1521
    %v1762 = vpack.c.b16 %v1526, %v1522
    %v1763 = vpack.c.b16 %v1531, %v1527
    %v1764 = vpack.c.b16 %v1532, %v1528
    %v1765 = vpack.c.b16 %v1533, %v1529
    %v1766 = vpack.c.b16 %v1534, %v1530
    %v1767 = vpack.c.b16 %v1539, %v1535
    %v1768 = vpack.c.b16 %v1540, %v1536
    %v1769 = vpack.c.b16 %v1541, %v1537
    %v1770 = vpack.c.b16 %v1542, %v1538
    %v1771 = vpack.c.b16 %v1547, %v1543
    %v1772 = vpack.c.b16 %v1548, %v1544
    %v1773 = vpack.c.b16 %v1549, %v1545
    %v1774 = vpack.c.b16 %v1550, %v1546
    %v1775 = vpack.c.b16 %v1555, %v1551
    %v1776 = vpack.c.b16 %v1556, %v1552
    %v1777 = vpack.c.b16 %v1557, %v1553
    %v1778 = vpack.c.b16 %v1558, %v1554
    %v1779 = vpack.c.b16 %v1563, %v1559
    %v1780 = vpack.c.b16 %v1564, %v1560
    %v1781 = vpack.c.b16 %v1565, %v1561
    %v1782 = vpack.c.b16 %v1566, %v1562
    %v1783 = vpack.c.b16 %v1571, %v1567
    %v1784 = vpack.c.b16 %v1572, %v1568
    %v1785 = vpack.c.b16 %v1573, %v1569
    %v1786 = vpack.c.b16 %v1574, %v1570
    %v1787 = vpack.c.b16 %v1579, %v1575
    %v1788 = vpack.c.b16 %v1580, %v1576
    %v1789 = vpack.c.b16 %v1581, %v1577
    %v1790 = vpack.c.b16 %v1582, %v1578
    %v1791 = vpack.c.b16 %v1587, %v1583
    %v1792 = vpack.c.b16 %v1588, %v1584
    %v1793 = vpack.c.b16 %v1589, %v1585
    %v1794 = vpack.c.b16 %v1590, %v1586
    %v1795 = vpack.c.b16 %v1595, %v1591
    %v1796 = vpack.c.b16 %v1596, %v1592
    %v1797 = vpack.c.b16 %v1597, %v1593
    %v1798 = vpack.c.b16 %v1598, %v1594
    %v1799 = vpack.c.b16 %v1603, %v1599
    %v1800 = vpack.c.b16 %v1604, %v1600
    %v1801 = vpack.c.b16 %v1605, %v1601
    %v1802 = vpack.c.b16 %v1606, %v1602
    %v1803 = vpack.c.b16 %v1611, %v1607
    %v1804 = vpack.c.b16 %v1612, %v1608
    %v1805 = vpack.c.b16 %v1613, %v1609
    %v1806 = vpack.c.b16 %v1614, %v1610
    %v1807 = vpack.c.b16 %v1619, %v1615
    %v1808 = vpack.c.b16 %v1620, %v1616
    %v1809 = vpack.c.b16 %v1621, %v1617
    %v1810 = vpack.c.b16 %v1622, %v1618
    %v1811 = vpack.c.b16 %v1627, %v1623
    %v1812 = vpack.c.b16 %v1628, %v1624
    %v1813 = vpack.c.b16 %v1629, %v1625
    %v1814 = vpack.c.b16 %v1630, %v1626
    %v1815 = vpack.c.b16 %v1635, %v1631
    %v1816 = vpack.c.b16 %v1636, %v1632
    %v1817 = vpack.c.b16 %v1637, %v1633
    %v1818 = vpack.c.b16 %v1638, %v1634
    %v1819 = vpack.c.b16 %v1643, %v1639
    %v1820 = vpack.c.b16 %v1644, %v1640
    %v1821 = vpack.c.b16 %v1645, %v1641
    %v1822 = vpack.c.b16 %v1646, %v1642
    %v1823 = vpack.c.b16 %v1651, %v1647
    %v1824 = vpack.c.b16 %v1652, %v1648
    %v1825 = vpack.c.b16 %v1653, %v1649
    %v1826 = vpack.c.b16 %v1654, %v1650
    %v1827 = vpack.c.b16 %v1659, %v1655
    %v1828 = vpack.c.b16 %v1660, %v1656
    %v1829 = vpack.c.b16 %v1661, %v1657
    %v1830 = vpack.c.b16 %v1662, %v1658
    %v1831 = vpack.c.b16 %v1667, %v1663
    %v1832 = vpack.c.b16 %v1668, %v1664
    %v1833 = vpack.c.b16 %v1669, %v1665
    %v1834 = vpack.c.b16 %v1670, %v1666
    %v1835 = vpack.c.b16 %v1675, %v1671
    %v1836 = vpack.c.b16 %v1676, %v1672
    %v1837 = vpack.c.b16 %v1677, %v1673
    %v1838 = vpack.c.b16 %v1678, %v1674
    %v1839 = vpack.c.b16 %v1683, %v1679
    %v1840 = vpack.c.b16 %v1684, %v1680
    %v1841 = vpack.c.b16 %v1685, %v1681
    %v1842 = vpack.c.b16 %v1686, %v1682
    %v1843 = vpack.c.b16 %v1691, %v1687
    %v1844 = vpack.c.b16 %v1692, %v1688
    %v1845 = vpack.c.b16 %v1693, %v1689
    %v1846 = vpack.c.b16 %v1694, %v1690
    %v1847 = vpack.c.b16 %v1699, %v1695
    %v1848 = vpack.c.b16 %v1700, %v1696
    %v1849 = vpack.c.b16 %v1701, %v1697
    %v1850 = vpack.c.b16 %v1702, %v1698
    %v1851 = vpack.c.b16 %v1707, %v1703
    %v1852 = vpack.c.b16 %v1708, %v1704
    %v1853 = vpack.c.b16 %v1709, %v1705
    %v1854 = vpack.c.b16 %v1710, %v1706
    %v1855 = vpack.c.b16 %v1715, %v1711
    %v1856 = vpack.c.b16 %v1716, %v1712
    %v1857 = vpack.c.b16 %v1717, %v1713
    %v1858 = vpack.c.b16 %v1718, %v1714
    %v1859 = vpack.c.b16 %v1723, %v1719
    %v1860 = vpack.c.b16 %v1724, %v1720
    %v1861 = vpack.c.b16 %v1725, %v1721
    %v1862 = vpack.c.b16 %v1726, %v1722
    %v1863 = vpack.c.b16 %v1731, %v1727
    %v1864 = vpack.c.b16 %v1732, %v1728
    %v1865 = vpack.c.b16 %v1733, %v1729
    %v1866 = vpack.c.b16 %v1734, %v1730
    %v1867 = vpack.c.b16 %v1739, %v1735
    %v1868 = vpack.c.b16 %v1740, %v1736
    %v1869 = vpack.c.b16 %v1741, %v1737
    %v1870 = vpack.c.b16 %v1742, %v1738
    %1999 = vmatprep.subr.bf16.mxu0 %v1772
    %2000 = vmatpush1.bf16.msra.mxu0 %v1771
    %2001 = vmatprep.subr.bf16.mxu0 %v1768
    %2002 = vmatpush1.bf16.msra.mxu0 %v1767
    %2003 = vmatprep.subr.bf16.mxu0 %v1764
    %2004 = vmatpush1.bf16.msra.mxu0 %v1763
    %2005 = vmatprep.subr.bf16.mxu0 %v1760
    %2006 = vmatpush1.bf16.msra.mxu0 %v1759
    %2007 = vmatprep.subr.bf16.mxu0 %v1756
    %2008 = vmatpush1.bf16.msra.mxu0 %v1755
    %2009 = vmatprep.subr.bf16.mxu0 %v1752
    %2010 = vmatpush1.bf16.msra.mxu0 %v1751
    %2011 = vmatprep.subr.bf16.mxu0 %v1748
    %2012 = vmatpush1.bf16.msra.mxu0 %v1747
    %2013 = vmatprep.subr.bf16.mxu0 %v1744
    %2014 = vmatpush1.bf16.msra.mxu0 %v1743
    %2015 = vmatprep.subr.bf16.mxu0 %v1804
    %2016 = vmatpush2.bf16.msra.mxu0 %v1803
    %2017 = vmatprep.subr.bf16.mxu0 %v1800
    %2018 = vmatpush2.bf16.msra.mxu0 %v1799
    %2019 = vmatprep.subr.bf16.mxu0 %v1796
    %2020 = vmatpush2.bf16.msra.mxu0 %v1795
    %2021 = vmatprep.subr.bf16.mxu0 %v1792
    %2022 = vmatpush2.bf16.msra.mxu0 %v1791
    %2023 = vmatprep.subr.bf16.mxu0 %v1788
    %2024 = vmatpush2.bf16.msra.mxu0 %v1787
    %2025 = vmatprep.subr.bf16.mxu0 %v1784
    %2026 = vmatpush2.bf16.msra.mxu0 %v1783
    %2027 = vmatprep.subr.bf16.mxu0 %v1780
    %2028 = vmatpush2.bf16.msra.mxu0 %v1779
    %2029 = vmatprep.subr.bf16.mxu0 %v1776
    %2030 = vmatpush2.bf16.msra.mxu0 %v1775
    %2031 = vmatprep.mubr.bf16.mxu0 %v1206
    %2032 = vmatmul.mubr.bf16.gmra.mxu0 %v1205
    %v2033 = vpop.f32.mrf.mxu0
    %v2034 = vadd.f32 %v1342, %v2033
    %v2035 = vpop.f32.mrf.mxu0
    %v2036 = vadd.f32 %v1346, %v2035
    %v2037 = vpop.f32.mrf.mxu0
    %v2038 = vadd.f32 %v1342, %v2037
    %v2039 = vpop.f32.mrf.mxu0
    %v2040 = vadd.f32 %v1346, %v2039
    %2041 = vdwg.mxu0
    %2042 = vmatprep.subr.bf16.mxu0 %v1836
    %2043 = vmatpush1.bf16.msra.mxu0 %v1835
    %2044 = vmatprep.subr.bf16.mxu0 %v1832
    %2045 = vmatpush1.bf16.msra.mxu0 %v1831
    %2046 = vmatprep.subr.bf16.mxu0 %v1828
    %2047 = vmatpush1.bf16.msra.mxu0 %v1827
    %2048 = vmatprep.subr.bf16.mxu0 %v1824
    %2049 = vmatpush1.bf16.msra.mxu0 %v1823
    %2050 = vmatprep.subr.bf16.mxu0 %v1820
    %2051 = vmatpush1.bf16.msra.mxu0 %v1819
    %2052 = vmatprep.subr.bf16.mxu0 %v1816
    %2053 = vmatpush1.bf16.msra.mxu0 %v1815
    %2054 = vmatprep.subr.bf16.mxu0 %v1812
    %2055 = vmatpush1.bf16.msra.mxu0 %v1811
    %2056 = vmatprep.subr.bf16.mxu0 %v1808
    %2057 = vmatpush1.bf16.msra.mxu0 %v1807
    %2058 = vmatprep.subr.bf16.mxu0 %v1868
    %2059 = vmatpush2.bf16.msra.mxu0 %v1867
    %2060 = vmatprep.subr.bf16.mxu0 %v1864
    %2061 = vmatpush2.bf16.msra.mxu0 %v1863
    %2062 = vmatprep.subr.bf16.mxu0 %v1860
    %2063 = vmatpush2.bf16.msra.mxu0 %v1859
    %2064 = vmatprep.subr.bf16.mxu0 %v1856
    %2065 = vmatpush2.bf16.msra.mxu0 %v1855
    %2066 = vmatprep.subr.bf16.mxu0 %v1852
    %2067 = vmatpush2.bf16.msra.mxu0 %v1851
    %2068 = vmatprep.subr.bf16.mxu0 %v1848
    %2069 = vmatpush2.bf16.msra.mxu0 %v1847
    %2070 = vmatprep.subr.bf16.mxu0 %v1844
    %2071 = vmatpush2.bf16.msra.mxu0 %v1843
    %2072 = vmatprep.subr.bf16.mxu0 %v1840
    %2073 = vmatpush2.bf16.msra.mxu0 %v1839
    %2074 = vmatprep.mubr.bf16.mxu0 %v1208
    %2075 = vmatmul.mubr.bf16.gmra.mxu0 %v1207
    %v2076 = vpop.f32.mrf.mxu0
    %v2077 = vadd.f32 %v2034, %v2076
    %v2078 = vpop.f32.mrf.mxu0
    %v2079 = vadd.f32 %v2036, %v2078
    %v2080 = vpop.f32.mrf.mxu0
    %v2081 = vadd.f32 %v2038, %v2080
    %v2082 = vpop.f32.mrf.mxu0
    %v2083 = vadd.f32 %v2040, %v2082
    %2084 = vdwg.mxu0
    %2085 = vmatprep.subr.bf16.mxu0 %v1774
    %2086 = vmatpush1.bf16.msra.mxu0 %v1773
    %2087 = vmatprep.subr.bf16.mxu0 %v1770
    %2088 = vmatpush1.bf16.msra.mxu0 %v1769
    %2089 = vmatprep.subr.bf16.mxu0 %v1766
    %2090 = vmatpush1.bf16.msra.mxu0 %v1765
    %2091 = vmatprep.subr.bf16.mxu0 %v1762
    %2092 = vmatpush1.bf16.msra.mxu0 %v1761
    %2093 = vmatprep.subr.bf16.mxu0 %v1758
    %2094 = vmatpush1.bf16.msra.mxu0 %v1757
    %2095 = vmatprep.subr.bf16.mxu0 %v1754
    %2096 = vmatpush1.bf16.msra.mxu0 %v1753
    %2097 = vmatprep.subr.bf16.mxu0 %v1750
    %2098 = vmatpush1.bf16.msra.mxu0 %v1749
    %2099 = vmatprep.subr.bf16.mxu0 %v1746
    %2100 = vmatpush1.bf16.msra.mxu0 %v1745
    %2101 = vmatprep.subr.bf16.mxu0 %v1806
    %2102 = vmatpush2.bf16.msra.mxu0 %v1805
    %2103 = vmatprep.subr.bf16.mxu0 %v1802
    %2104 = vmatpush2.bf16.msra.mxu0 %v1801
    %2105 = vmatprep.subr.bf16.mxu0 %v1798
    %2106 = vmatpush2.bf16.msra.mxu0 %v1797
    %2107 = vmatprep.subr.bf16.mxu0 %v1794
    %2108 = vmatpush2.bf16.msra.mxu0 %v1793
    %2109 = vmatprep.subr.bf16.mxu0 %v1790
    %2110 = vmatpush2.bf16.msra.mxu0 %v1789
    %2111 = vmatprep.subr.bf16.mxu0 %v1786
    %2112 = vmatpush2.bf16.msra.mxu0 %v1785
    %2113 = vmatprep.subr.bf16.mxu0 %v1782
    %2114 = vmatpush2.bf16.msra.mxu0 %v1781
    %2115 = vmatprep.subr.bf16.mxu0 %v1778
    %2116 = vmatpush2.bf16.msra.mxu0 %v1777
    %2117 = vmatprep.mubr.bf16.mxu0 %v1206
    %2118 = vmatmul.mubr.bf16.gmra.mxu0 %v1205
    %v2119 = vpop.f32.mrf.mxu0
    %v2120 = vadd.f32 %v1350, %v2119
    %v2121 = vpop.f32.mrf.mxu0
    %v2122 = vadd.f32 %v1354, %v2121
    %v2123 = vpop.f32.mrf.mxu0
    %v2124 = vadd.f32 %v1350, %v2123
    %v2125 = vpop.f32.mrf.mxu0
    %v2126 = vadd.f32 %v1354, %v2125
    %2127 = vdwg.mxu0
    %2128 = vmatprep.subr.bf16.mxu0 %v1838
    %2129 = vmatpush1.bf16.msra.mxu0 %v1837
    %2130 = vmatprep.subr.bf16.mxu0 %v1834
    %2131 = vmatpush1.bf16.msra.mxu0 %v1833
    %2132 = vmatprep.subr.bf16.mxu0 %v1830
    %2133 = vmatpush1.bf16.msra.mxu0 %v1829
    %2134 = vmatprep.subr.bf16.mxu0 %v1826
    %2135 = vmatpush1.bf16.msra.mxu0 %v1825
    %2136 = vmatprep.subr.bf16.mxu0 %v1822
    %2137 = vmatpush1.bf16.msra.mxu0 %v1821
    %2138 = vmatprep.subr.bf16.mxu0 %v1818
    %2139 = vmatpush1.bf16.msra.mxu0 %v1817
    %2140 = vmatprep.subr.bf16.mxu0 %v1814
    %2141 = vmatpush1.bf16.msra.mxu0 %v1813
    %2142 = vmatprep.subr.bf16.mxu0 %v1810
    %2143 = vmatpush1.bf16.msra.mxu0 %v1809
    %2144 = vmatprep.subr.bf16.mxu0 %v1870
    %2145 = vmatpush2.bf16.msra.mxu0 %v1869
    %2146 = vmatprep.subr.bf16.mxu0 %v1866
    %2147 = vmatpush2.bf16.msra.mxu0 %v1865
    %2148 = vmatprep.subr.bf16.mxu0 %v1862
    %2149 = vmatpush2.bf16.msra.mxu0 %v1861
    %2150 = vmatprep.subr.bf16.mxu0 %v1858
    %2151 = vmatpush2.bf16.msra.mxu0 %v1857
    %2152 = vmatprep.subr.bf16.mxu0 %v1854
    %2153 = vmatpush2.bf16.msra.mxu0 %v1853
    %2154 = vmatprep.subr.bf16.mxu0 %v1850
    %2155 = vmatpush2.bf16.msra.mxu0 %v1849
    %2156 = vmatprep.subr.bf16.mxu0 %v1846
    %2157 = vmatpush2.bf16.msra.mxu0 %v1845
    %2158 = vmatprep.subr.bf16.mxu0 %v1842
    %2159 = vmatpush2.bf16.msra.mxu0 %v1841
    %2160 = vmatprep.mubr.bf16.mxu0 %v1208
    %2161 = vmatmul.mubr.bf16.gmra.mxu0 %v1207
    %v2162 = vpop.f32.mrf.mxu0
    %v2163 = vadd.f32 %v2120, %v2162
    %v2164 = vpop.f32.mrf.mxu0
    %v2165 = vadd.f32 %v2122, %v2164
    %v2166 = vpop.f32.mrf.mxu0
    %v2167 = vadd.f32 %v2124, %v2166
    %v2168 = vpop.f32.mrf.mxu0
    %v2169 = vadd.f32 %v2126, %v2168
    %2170 = vdwg.mxu0
    %v2171 = vmax.f32 %v2077, 0.0
    %v2172 = vmax.f32 %v2079, 0.0
    %v2173 = vmax.f32 %v2163, 0.0
    %v2174 = vmax.f32 %v2165, 0.0
    %v2175 = vmax.f32 %v2081, 0.0
    %v2176 = vmax.f32 %v2083, 0.0
    %v2177 = vmax.f32 %v2167, 0.0
    %v2178 = vmax.f32 %v2169, 0.0
    %v2179 = vpack.c.bf16 %v2175, %v2171
    %v2180 = vpack.c.bf16 %v2176, %v2172
    %v2181 = vpack.c.bf16 %v2177, %v2173
    %v2182 = vpack.c.bf16 %v2178, %v2174
    %v2183 = vld [vmem:[#allocation7] sm:$0xf]
    %v2184 = vld [vmem:[#allocation7 + $0x4] sm:$0xf]
    %v2185 = vld [vmem:[#allocation7 + $0x8] sm:$0xf]
    %v2186 = vld [vmem:[#allocation7 + $0xc] sm:$0xf]
    %v2187 = vld [vmem:[#allocation7 + $0x10] sm:$0xf]
    %v2188 = vld [vmem:[#allocation7 + $0x14] sm:$0xf]
    %v2189 = vld [vmem:[#allocation7 + $0x18] sm:$0xf]
    %v2190 = vld [vmem:[#allocation7 + $0x1c] sm:$0xf]
    %v2191 = vld [vmem:[#allocation7 + $0x20] sm:$0xf]
    %v2192 = vld [vmem:[#allocation7 + $0x24] sm:$0xf]
    %v2193 = vld [vmem:[#allocation7 + $0x28] sm:$0xf]
    %v2194 = vld [vmem:[#allocation7 + $0x2c] sm:$0xf]
    %v2195 = vld [vmem:[#allocation7 + $0x30] sm:$0xf]
    %v2196 = vld [vmem:[#allocation7 + $0x34] sm:$0xf]
    %v2197 = vld [vmem:[#allocation7 + $0x38] sm:$0xf]
    %v2198 = vld [vmem:[#allocation7 + $0x3c] sm:$0xf]
    %v2199 = vld [vmem:[#allocation7 + $0x40] sm:$0xf]
    %v2200 = vld [vmem:[#allocation7 + $0x44] sm:$0xf]
    %v2201 = vld [vmem:[#allocation7 + $0x48] sm:$0xf]
    %v2202 = vld [vmem:[#allocation7 + $0x4c] sm:$0xf]
    %v2203 = vld [vmem:[#allocation7 + $0x50] sm:$0xf]
    %v2204 = vld [vmem:[#allocation7 + $0x54] sm:$0xf]
    %v2205 = vld [vmem:[#allocation7 + $0x58] sm:$0xf]
    %v2206 = vld [vmem:[#allocation7 + $0x5c] sm:$0xf]
    %v2207 = vld [vmem:[#allocation7 + $0x60] sm:$0xf]
    %v2208 = vld [vmem:[#allocation7 + $0x64] sm:$0xf]
    %v2209 = vld [vmem:[#allocation7 + $0x68] sm:$0xf]
    %v2210 = vld [vmem:[#allocation7 + $0x6c] sm:$0xf]
    %v2211 = vld [vmem:[#allocation7 + $0x70] sm:$0xf]
    %v2212 = vld [vmem:[#allocation7 + $0x74] sm:$0xf]
    %v2213 = vld [vmem:[#allocation7 + $0x78] sm:$0xf]
    %v2214 = vld [vmem:[#allocation7 + $0x7c] sm:$0xf]
    %v2215 = vld [vmem:[#allocation7 + $0x80] sm:$0xf]
    %v2216 = vld [vmem:[#allocation7 + $0x84] sm:$0xf]
    %v2217 = vld [vmem:[#allocation7 + $0x88] sm:$0xf]
    %v2218 = vld [vmem:[#allocation7 + $0x8c] sm:$0xf]
    %v2219 = vld [vmem:[#allocation7 + $0x90] sm:$0xf]
    %v2220 = vld [vmem:[#allocation7 + $0x94] sm:$0xf]
    %v2221 = vld [vmem:[#allocation7 + $0x98] sm:$0xf]
    %v2222 = vld [vmem:[#allocation7 + $0x9c] sm:$0xf]
    %v2223 = vld [vmem:[#allocation7 + $0xa0] sm:$0xf]
    %v2224 = vld [vmem:[#allocation7 + $0xa4] sm:$0xf]
    %v2225 = vld [vmem:[#allocation7 + $0xa8] sm:$0xf]
    %v2226 = vld [vmem:[#allocation7 + $0xac] sm:$0xf]
    %v2227 = vld [vmem:[#allocation7 + $0xb0] sm:$0xf]
    %v2228 = vld [vmem:[#allocation7 + $0xb4] sm:$0xf]
    %v2229 = vld [vmem:[#allocation7 + $0xb8] sm:$0xf]
    %v2230 = vld [vmem:[#allocation7 + $0xbc] sm:$0xf]
    %v2231 = vld [vmem:[#allocation7 + $0xc0] sm:$0xf]
    %v2232 = vld [vmem:[#allocation7 + $0xc4] sm:$0xf]
    %v2233 = vld [vmem:[#allocation7 + $0xc8] sm:$0xf]
    %v2234 = vld [vmem:[#allocation7 + $0xcc] sm:$0xf]
    %v2235 = vld [vmem:[#allocation7 + $0xd0] sm:$0xf]
    %v2236 = vld [vmem:[#allocation7 + $0xd4] sm:$0xf]
    %v2237 = vld [vmem:[#allocation7 + $0xd8] sm:$0xf]
    %v2238 = vld [vmem:[#allocation7 + $0xdc] sm:$0xf]
    %v2239 = vld [vmem:[#allocation7 + $0xe0] sm:$0xf]
    %v2240 = vld [vmem:[#allocation7 + $0xe4] sm:$0xf]
    %v2241 = vld [vmem:[#allocation7 + $0xe8] sm:$0xf]
    %v2242 = vld [vmem:[#allocation7 + $0xec] sm:$0xf]
    %v2243 = vld [vmem:[#allocation7 + $0xf0] sm:$0xf]
    %v2244 = vld [vmem:[#allocation7 + $0xf4] sm:$0xf]
    %v2245 = vld [vmem:[#allocation7 + $0xf8] sm:$0xf]
    %v2246 = vld [vmem:[#allocation7 + $0xfc] sm:$0xf]
    %v2247 = vld [vmem:[%s8] sm:$0x1]
    %v2249 = vlaneseq
    %v2250 = vshrl.u32 %v2249, 7
    %v2251 = vsub.s32 0, %v2250
    %v2252 = vrot.slane %v2247, %v2251
    %v2318 = vunpack.c.l.b16 %v2183
    %v2319 = vunpack.c.l.b16 %v2184
    %v2320 = vunpack.c.l.b16 %v2185
    %v2321 = vunpack.c.l.b16 %v2186
    %v2322 = vunpack.c.l.b16 %v2187
    %v2323 = vunpack.c.l.b16 %v2188
    %v2324 = vunpack.c.l.b16 %v2189
    %v2325 = vunpack.c.l.b16 %v2190
    %v2326 = vunpack.c.l.b16 %v2191
    %v2327 = vunpack.c.l.b16 %v2192
    %v2328 = vunpack.c.l.b16 %v2193
    %v2329 = vunpack.c.l.b16 %v2194
    %v2330 = vunpack.c.l.b16 %v2195
    %v2331 = vunpack.c.l.b16 %v2196
    %v2332 = vunpack.c.l.b16 %v2197
    %v2333 = vunpack.c.l.b16 %v2198
    %v2334 = vunpack.c.l.b16 %v2199
    %v2335 = vunpack.c.l.b16 %v2200
    %v2336 = vunpack.c.l.b16 %v2201
    %v2337 = vunpack.c.l.b16 %v2202
    %v2338 = vunpack.c.l.b16 %v2203
    %v2339 = vunpack.c.l.b16 %v2204
    %v2340 = vunpack.c.l.b16 %v2205
    %v2341 = vunpack.c.l.b16 %v2206
    %v2342 = vunpack.c.l.b16 %v2207
    %v2343 = vunpack.c.l.b16 %v2208
    %v2344 = vunpack.c.l.b16 %v2209
    %v2345 = vunpack.c.l.b16 %v2210
    %v2346 = vunpack.c.l.b16 %v2211
    %v2347 = vunpack.c.l.b16 %v2212
    %v2348 = vunpack.c.l.b16 %v2213
    %v2349 = vunpack.c.l.b16 %v2214
    %v2350 = vunpack.c.l.b16 %v2215
    %v2351 = vunpack.c.l.b16 %v2216
    %v2352 = vunpack.c.l.b16 %v2217
    %v2353 = vunpack.c.l.b16 %v2218
    %v2354 = vunpack.c.l.b16 %v2219
    %v2355 = vunpack.c.l.b16 %v2220
    %v2356 = vunpack.c.l.b16 %v2221
    %v2357 = vunpack.c.l.b16 %v2222
    %v2358 = vunpack.c.l.b16 %v2223
    %v2359 = vunpack.c.l.b16 %v2224
    %v2360 = vunpack.c.l.b16 %v2225
    %v2361 = vunpack.c.l.b16 %v2226
    %v2362 = vunpack.c.l.b16 %v2227
    %v2363 = vunpack.c.l.b16 %v2228
    %v2364 = vunpack.c.l.b16 %v2229
    %v2365 = vunpack.c.l.b16 %v2230
    %v2366 = vunpack.c.l.b16 %v2231
    %v2367 = vunpack.c.l.b16 %v2232
    %v2368 = vunpack.c.l.b16 %v2233
    %v2369 = vunpack.c.l.b16 %v2234
    %v2370 = vunpack.c.l.b16 %v2235
    %v2371 = vunpack.c.l.b16 %v2236
    %v2372 = vunpack.c.l.b16 %v2237
    %v2373 = vunpack.c.l.b16 %v2238
    %v2374 = vunpack.c.l.b16 %v2239
    %v2375 = vunpack.c.l.b16 %v2240
    %v2376 = vunpack.c.l.b16 %v2241
    %v2377 = vunpack.c.l.b16 %v2242
    %v2378 = vunpack.c.l.b16 %v2243
    %v2379 = vunpack.c.l.b16 %v2244
    %v2380 = vunpack.c.l.b16 %v2245
    %v2381 = vunpack.c.l.b16 %v2246
    %v2382 = vpack.c.b16 %v2319, %v2318
    %v2383 = vpack.c.b16 %v2321, %v2320
    %v2384 = vpack.c.b16 %v2323, %v2322
    %v2385 = vpack.c.b16 %v2325, %v2324
    %v2386 = vpack.c.b16 %v2327, %v2326
    %v2387 = vpack.c.b16 %v2329, %v2328
    %v2388 = vpack.c.b16 %v2331, %v2330
    %v2389 = vpack.c.b16 %v2333, %v2332
    %v2390 = vpack.c.b16 %v2335, %v2334
    %v2391 = vpack.c.b16 %v2337, %v2336
    %v2392 = vpack.c.b16 %v2339, %v2338
    %v2393 = vpack.c.b16 %v2341, %v2340
    %v2394 = vpack.c.b16 %v2343, %v2342
    %v2395 = vpack.c.b16 %v2345, %v2344
    %v2396 = vpack.c.b16 %v2347, %v2346
    %v2397 = vpack.c.b16 %v2349, %v2348
    %v2398 = vpack.c.b16 %v2351, %v2350
    %v2399 = vpack.c.b16 %v2353, %v2352
    %v2400 = vpack.c.b16 %v2355, %v2354
    %v2401 = vpack.c.b16 %v2357, %v2356
    %v2402 = vpack.c.b16 %v2359, %v2358
    %v2403 = vpack.c.b16 %v2361, %v2360
    %v2404 = vpack.c.b16 %v2363, %v2362
    %v2405 = vpack.c.b16 %v2365, %v2364
    %v2406 = vpack.c.b16 %v2367, %v2366
    %v2407 = vpack.c.b16 %v2369, %v2368
    %v2408 = vpack.c.b16 %v2371, %v2370
    %v2409 = vpack.c.b16 %v2373, %v2372
    %v2410 = vpack.c.b16 %v2375, %v2374
    %v2411 = vpack.c.b16 %v2377, %v2376
    %v2412 = vpack.c.b16 %v2379, %v2378
    %v2413 = vpack.c.b16 %v2381, %v2380
    %2446 = vmatprep.subr.bf16.mxu0 0
    %2447 = vmatpush1.bf16.msra.mxu0 %v2389
    %2448 = vmatprep.subr.bf16.mxu0 0
    %2449 = vmatpush1.bf16.msra.mxu0 %v2388
    %2450 = vmatprep.subr.bf16.mxu0 0
    %2451 = vmatpush1.bf16.msra.mxu0 %v2387
    %2452 = vmatprep.subr.bf16.mxu0 0
    %2453 = vmatpush1.bf16.msra.mxu0 %v2386
    %2454 = vmatprep.subr.bf16.mxu0 0
    %2455 = vmatpush1.bf16.msra.mxu0 %v2385
    %2456 = vmatprep.subr.bf16.mxu0 0
    %2457 = vmatpush1.bf16.msra.mxu0 %v2384
    %2458 = vmatprep.subr.bf16.mxu0 0
    %2459 = vmatpush1.bf16.msra.mxu0 %v2383
    %2460 = vmatprep.subr.bf16.mxu0 0
    %2461 = vmatpush1.bf16.msra.mxu0 %v2382
    %2462 = vmatprep.subr.bf16.mxu0 0
    %2463 = vmatpush2.bf16.msra.mxu0 %v2397
    %2464 = vmatprep.subr.bf16.mxu0 0
    %2465 = vmatpush2.bf16.msra.mxu0 %v2396
    %2466 = vmatprep.subr.bf16.mxu0 0
    %2467 = vmatpush2.bf16.msra.mxu0 %v2395
    %2468 = vmatprep.subr.bf16.mxu0 0
    %2469 = vmatpush2.bf16.msra.mxu0 %v2394
    %2470 = vmatprep.subr.bf16.mxu0 0
    %2471 = vmatpush2.bf16.msra.mxu0 %v2393
    %2472 = vmatprep.subr.bf16.mxu0 0
    %2473 = vmatpush2.bf16.msra.mxu0 %v2392
    %2474 = vmatprep.subr.bf16.mxu0 0
    %2475 = vmatpush2.bf16.msra.mxu0 %v2391
    %2476 = vmatprep.subr.bf16.mxu0 0
    %2477 = vmatpush2.bf16.msra.mxu0 %v2390
    %2478 = vmatprep.mubr.bf16.mxu0 %v2180
    %2479 = vmatmul.mubr.bf16.gmra.mxu0 %v2179
    %v2480 = vpop.f32.mrf.mxu0
    %v2481 = vadd.f32 %v2252, %v2480
    %v2482 = vpop.f32.mrf.mxu0
    %v2483 = vpop.f32.mrf.mxu0
    %v2484 = vadd.f32 %v2252, %v2483
    %v2485 = vpop.f32.mrf.mxu0
    %2486 = vdwg.mxu0
    %2487 = vmatprep.subr.bf16.mxu0 0
    %2488 = vmatpush1.bf16.msra.mxu0 %v2405
    %2489 = vmatprep.subr.bf16.mxu0 0
    %2490 = vmatpush1.bf16.msra.mxu0 %v2404
    %2491 = vmatprep.subr.bf16.mxu0 0
    %2492 = vmatpush1.bf16.msra.mxu0 %v2403
    %2493 = vmatprep.subr.bf16.mxu0 0
    %2494 = vmatpush1.bf16.msra.mxu0 %v2402
    %2495 = vmatprep.subr.bf16.mxu0 0
    %2496 = vmatpush1.bf16.msra.mxu0 %v2401
    %2497 = vmatprep.subr.bf16.mxu0 0
    %2498 = vmatpush1.bf16.msra.mxu0 %v2400
    %2499 = vmatprep.subr.bf16.mxu0 0
    %2500 = vmatpush1.bf16.msra.mxu0 %v2399
    %2501 = vmatprep.subr.bf16.mxu0 0
    %2502 = vmatpush1.bf16.msra.mxu0 %v2398
    %2503 = vmatprep.subr.bf16.mxu0 0
    %2504 = vmatpush2.bf16.msra.mxu0 %v2413
    %2505 = vmatprep.subr.bf16.mxu0 0
    %2506 = vmatpush2.bf16.msra.mxu0 %v2412
    %2507 = vmatprep.subr.bf16.mxu0 0
    %2508 = vmatpush2.bf16.msra.mxu0 %v2411
    %2509 = vmatprep.subr.bf16.mxu0 0
    %2510 = vmatpush2.bf16.msra.mxu0 %v2410
    %2511 = vmatprep.subr.bf16.mxu0 0
    %2512 = vmatpush2.bf16.msra.mxu0 %v2409
    %2513 = vmatprep.subr.bf16.mxu0 0
    %2514 = vmatpush2.bf16.msra.mxu0 %v2408
    %2515 = vmatprep.subr.bf16.mxu0 0
    %2516 = vmatpush2.bf16.msra.mxu0 %v2407
    %2517 = vmatprep.subr.bf16.mxu0 0
    %2518 = vmatpush2.bf16.msra.mxu0 %v2406
    %2519 = vmatprep.mubr.bf16.mxu0 %v2182
    %2520 = vmatmul.mubr.bf16.gmra.mxu0 %v2181
    %v2521 = vpop.f32.mrf.mxu0
    %v2522 = vadd.f32 %v2481, %v2521
    %v2523 = vpop.f32.mrf.mxu0
    %v2524 = vpop.f32.mrf.mxu0
    %v2525 = vadd.f32 %v2484, %v2524
    %v2526 = vpop.f32.mrf.mxu0
    %2527 = vdwg.mxu0
    %v2528 = vpack.c.bf16 %v2525, %v2522
    %v2530 = vunpack.c.l.b16 %v2528
    %v2531 = vunpack.c.h.b16 %v2528
    %v2532 = vpack.c.b16 %v2530, %v2530
    %v2533 = vpack.c.b16 %v2531, %v2531
    %2536 = vst [vmem:[#allocation8] sm:$0xf] %v2532
    %2537 = vst [vmem:[#allocation8 + $0x4] sm:$0xf] %v2533
    // Predicated region
    $region50: #{tpu_custom_call.1} parent=1 // pred_check
      _
    $region51: #{tpu_custom_call.1} parent=1 // pred_check_branch
      %2539 = sbr.rel (0) target = $region53
    $region52: #{tpu_custom_call.1} parent=1 // pred_region
      %s2541 = ssub.s32 128, 128
      %2542 = vsyncadd [#allocation4], %s2541
      %s2543 = sshll.u32 [#allocation8], 4
      %s2544 = int_to_ptr.vmem [resolvable:$true] %s2543
      %2549 = dma.vmem_to_hbm [thread:$0]  %s2544, 128, %s9, [#allocation4], 64, 64, 4
    $region53: #{tpu_custom_call.1} parent=1 // pred_fallthru
      _
    // Predicated region
    $region54: #{tpu_custom_call.1} parent=1 // pred_check
      _
    $region55: #{tpu_custom_call.1} parent=1 // pred_check_branch
      %2551 = sbr.rel (0) target = $region57
    $region56: #{tpu_custom_call.1} parent=1 // pred_region
      %2552 = dma.done [#allocation4], 128
    $region57: #{tpu_custom_call.1} parent=1 // pred_fallthru
      _
    %2553 = vsyncpa [#allocation3], 1
    %2554 = vsyncpa [#allocation6], 1
    %2555 = vsyncpa [#allocation4], 1

</llo_original>
